<compile_context>
chip_gen: v6e
topology: v6e:2x2x1
jax: 0.10.0
libtpu: 0.0.40
codegen_flags: <defaults>
</compile_context>

<pallas_src>
import jax
import jax.numpy as jnp
from jax.experimental import pallas as pl
from jax.experimental.pallas import tpu as pltpu


_LANE = 128
_SUBLANE = 8


def _round_up(v, m):
    return ((v + m - 1) // m) * m


def _pad2(a, shape):
    """Zero-pad a 2-D array up to `shape`."""
    return jnp.pad(a, [(0, t - s) for s, t in zip(a.shape, shape)])


def _task_encoder_kernel(x_ref, y_ref, w1x_ref, w1y_ref, b1_ref,
                         w2_ref, b2_ref, w3_ref, b3_ref, out_ref):
    """Fused 3-layer MLP with concat([x, y]) folded into layer 1.

    cat([x, y]) @ W1 == x @ W1[:x_dim] + y * W1[x_dim]   (y is one column).
    Dropout is eval-mode identity, so Dropout+ReLU collapses to ReLU.
    """
    x = x_ref[...]                                          # (TM, x_pad)  f32
    y = y_ref[...]                                          # (TM, 1)      f32

    # Weights may arrive as bf16 (HBM/VMEM traffic savings); compute in f32.
    w1x = w1x_ref[...].astype(jnp.float32)                  # (x_pad, H1)
    w1y = w1y_ref[...].astype(jnp.float32)                  # (1, H1)

    h1 = jnp.dot(x, w1x, preferred_element_type=jnp.float32)
    h1 = h1 + y * w1y + b1_ref[...]                         # fused y-column + bias
    h1 = jnp.maximum(h1, 0.0)                               # Dropout(eval) -> ReLU

    h2 = jnp.dot(h1, w2_ref[...].astype(jnp.float32),
                 preferred_element_type=jnp.float32) + b2_ref[...]
    h2 = jnp.maximum(h2, 0.0)                               # Dropout(eval) -> ReLU

    out = jnp.dot(h2, w3_ref[...].astype(jnp.float32),
                  preferred_element_type=jnp.float32) + b3_ref[...]
    out_ref[...] = out.astype(out_ref.dtype)                # lane-dense store


def task_encoder_forward(x, y, params, *, tile_m=512, weight_dtype=jnp.bfloat16):
    """x: (N, x_dim); y: (N,) or (N, 1). Returns (N, final_dim) float32.

    weight_dtype=jnp.bfloat16 halves weight HBM/VMEM bytes (accumulation stays
    f32); pass jnp.float32 to reproduce the PyTorch f32 weights exactly.
    Handles arbitrary N by padding the batch to a multiple of the tile.
    """
    w1, b1, w2, b2, w3, b3 = params
    n, x_dim = x.shape
    in_dim, h1_dim = w1.shape
    h2_dim = w2.shape[1]
    final_dim = w3.shape[1]
    assert in_dim == x_dim + 1, "W1 must take x_dim + 1 inputs (x ++ y column)"

    # ---- lane-pad feature dims to 128; sublane-pad the first contraction ----
    x_pad = _round_up(x_dim, _SUBLANE)
    h1_p = _round_up(h1_dim, _LANE)
    h2_p = _round_up(h2_dim, _LANE)
    fin_p = _round_up(final_dim, _LANE)

    w1x = _pad2(w1[:x_dim], (x_pad, h1_p)).astype(weight_dtype)
    w1y = _pad2(w1[x_dim:in_dim], (1, h1_p)).astype(weight_dtype)   # y column of W1
    b1p = _pad2(b1.reshape(1, -1), (1, h1_p)).astype(jnp.float32)
    w2p = _pad2(w2, (h1_p, h2_p)).astype(weight_dtype)
    b2p = _pad2(b2.reshape(1, -1), (1, h2_p)).astype(jnp.float32)
    w3p = _pad2(w3, (h2_p, fin_p)).astype(weight_dtype)
    b3p = _pad2(b3.reshape(1, -1), (1, fin_p)).astype(jnp.float32)

    # ---- batch tiling: big tiles, arbitrary N via row padding ----
    tile = _round_up(min(tile_m, _round_up(n, _SUBLANE)), _SUBLANE)
    n_pad = _round_up(n, tile)
    grid = (n_pad // tile,)

    xp = _pad2(x.astype(jnp.float32), (n_pad, x_pad))
    yp = _pad2(jnp.reshape(y, (-1, 1)).astype(jnp.float32), (n_pad, 1))

    in_specs = [
        pl.BlockSpec((tile, x_pad), lambda i: (i, 0)),      # x tile (streamed)
        pl.BlockSpec((tile, 1), lambda i: (i, 0)),          # y tile (streamed)
        pl.BlockSpec((x_pad, h1_p), lambda i: (0, 0)),      # W1[:x_dim]   (resident)
        pl.BlockSpec((1, h1_p), lambda i: (0, 0)),          # W1[x_dim]    (y column)
        pl.BlockSpec((1, h1_p), lambda i: (0, 0)),          # b1
        pl.BlockSpec((h1_p, h2_p), lambda i: (0, 0)),       # W2
        pl.BlockSpec((1, h2_p), lambda i: (0, 0)),          # b2
        pl.BlockSpec((h2_p, fin_p), lambda i: (0, 0)),      # W3
        pl.BlockSpec((1, fin_p), lambda i: (0, 0)),         # b3
    ]
    # Lane-dense output slab (fin_p multiple of 128) -> unmasked vector stores.
    out_spec = pl.BlockSpec((tile, fin_p), lambda i: (i, 0))

    out_padded = pl.pallas_call(
        _task_encoder_kernel,
        out_shape=jax.ShapeDtypeStruct((n_pad, fin_p), jnp.float32),
        grid=grid,
        in_specs=in_specs,
        out_specs=out_spec,
        compiler_params=pltpu.CompilerParams(
            # Independent batch tiles: shardable across v7x's 2 TensorCores.
            dimension_semantics=("parallel",)),
    )(xp, yp, w1x, w1y, b1p, w2p, b2p, w3p, b3p)

    return out_padded[:n, :final_dim]


def init_task_encoder_params(key, x_dim, y_dim, h1_dim, h2_dim, final_dim):
    """Deterministic synthetic params. Weights stored as [in, out] (i.e. W.T
    of the PyTorch nn.Linear weight)."""
    in_dim = x_dim + y_dim
    keys = jax.random.split(key, 6)

    def linear(kw, kb, fan_in, fan_out):
        bound = 1.0 / jnp.sqrt(fan_in)
        w = jax.random.uniform(kw, (fan_in, fan_out), jnp.float32, -bound, bound)
        b = jax.random.uniform(kb, (1, fan_out), jnp.float32, -bound, bound)
        return w, b

    w1, b1 = linear(keys[0], keys[1], in_dim, h1_dim)
    w2, b2 = linear(keys[2], keys[3], h1_dim, h2_dim)
    w3, b3 = linear(keys[4], keys[5], h2_dim, final_dim)
    return (w1, b1, w2, b2, w3, b3)


if __name__ == "__main__":
    # Shapes consistent with the module's forward (y_dim = 1 since y.view(-1,1)
    # is concatenated onto x). Batch deliberately NOT a multiple of the tile to
    # exercise the padding path; tile_m=512 gives a 2-step grid.
    x_dim, y_dim = 31, 1
    h1_dim, h2_dim, final_dim = 64, 64, 32
    dropout_rate = 0.2      # eval-mode: identity
    batch = 1000

    key = jax.random.PRNGKey(0)
    k_x, k_y, k_p = jax.random.split(key, 3)

    x = jax.random.normal(k_x, (batch, x_dim), dtype=jnp.float32)
    y = jax.random.normal(k_y, (batch,), dtype=jnp.float32)

    params = init_task_encoder_params(k_p, x_dim, y_dim, h1_dim, h2_dim, final_dim)

    out = task_encoder_forward(x, y, params, tile_m=512)
    jax.block_until_ready(out)

    # Pure-JAX reference of the same math. Weights rounded to bf16 exactly as
    # the (default) kernel path does; use weight_dtype=jnp.float32 above for
    # bit-exact f32 PyTorch weights.
    w1, b1, w2, b2, w3, b3 = params
    cast = lambda w: w.astype(jnp.bfloat16).astype(jnp.float32)
    xy = jnp.concatenate([x, y.reshape(-1, 1)], axis=1)
    ref = jnp.maximum(xy @ cast(w1) + b1, 0.0)
    ref = jnp.maximum(ref @ cast(w2) + b2, 0.0)
    ref = ref @ cast(w3) + b3

    assert out.shape == (batch, final_dim)
    max_err = float(jnp.max(jnp.abs(out - ref)))
    assert jnp.allclose(out, ref, atol=1e-4, rtol=1e-4), f"max_err={max_err}"

    print("KERNEL_OK")
</pallas_src>

<mosaic_0001>
module attributes {stable_mosaic.version = 11 : i64} {
  func.func @_task_encoder_kernel(%arg0: i32, %arg1: memref<512x32xf32, #tpu.memory_space<vmem>>, %arg2: memref<512x1xf32, #tpu.memory_space<vmem>>, %arg3: memref<32x128xbf16, #tpu.memory_space<vmem>>, %arg4: memref<1x128xbf16, #tpu.memory_space<vmem>>, %arg5: memref<1x128xf32, #tpu.memory_space<vmem>>, %arg6: memref<128x128xbf16, #tpu.memory_space<vmem>>, %arg7: memref<1x128xf32, #tpu.memory_space<vmem>>, %arg8: memref<128x128xbf16, #tpu.memory_space<vmem>>, %arg9: memref<1x128xf32, #tpu.memory_space<vmem>>, %arg10: memref<512x128xf32, #tpu.memory_space<vmem>>) attributes {dimension_semantics = [#tpu.dimension_semantics<parallel>], iteration_bounds = array<i64: 2>, scalar_prefetch = 0 : i64, scratch_operands = 0 : i64, tpu.core_type = #tpu.core_type<tc>, window_params = [{transform_indices = @transform_0, window_bounds = array<i64: 512, 32>}, {transform_indices = @transform_1, window_bounds = array<i64: 512, 1>}, {pipeline_mode = #tpu.pipeline_mode<synchronous>, transform_indices = @transform_2, window_bounds = array<i64: 32, 128>}, {pipeline_mode = #tpu.pipeline_mode<synchronous>, transform_indices = @transform_3, window_bounds = array<i64: 1, 128>}, {pipeline_mode = #tpu.pipeline_mode<synchronous>, transform_indices = @transform_4, window_bounds = array<i64: 1, 128>}, {pipeline_mode = #tpu.pipeline_mode<synchronous>, transform_indices = @transform_5, window_bounds = array<i64: 128, 128>}, {pipeline_mode = #tpu.pipeline_mode<synchronous>, transform_indices = @transform_6, window_bounds = array<i64: 1, 128>}, {pipeline_mode = #tpu.pipeline_mode<synchronous>, transform_indices = @transform_7, window_bounds = array<i64: 128, 128>}, {pipeline_mode = #tpu.pipeline_mode<synchronous>, transform_indices = @transform_8, window_bounds = array<i64: 1, 128>}, {transform_indices = @transform_9, window_bounds = array<i64: 512, 128>}]} {
    %c0 = arith.constant 0 : index
    %c0_0 = arith.constant 0 : index
    %0 = vector.load %arg1[%c0, %c0_0] : memref<512x32xf32, #tpu.memory_space<vmem>>, vector<512x32xf32>
    %c0_1 = arith.constant 0 : index
    %c0_2 = arith.constant 0 : index
    %1 = vector.load %arg2[%c0_1, %c0_2] : memref<512x1xf32, #tpu.memory_space<vmem>>, vector<512x1xf32>
    %c0_3 = arith.constant 0 : index
    %c0_4 = arith.constant 0 : index
    %2 = vector.load %arg3[%c0_3, %c0_4] : memref<32x128xbf16, #tpu.memory_space<vmem>>, vector<32x128xbf16>
    %3 = arith.extf %2 : vector<32x128xbf16> to vector<32x128xf32>
    %c0_5 = arith.constant 0 : index
    %c0_6 = arith.constant 0 : index
    %4 = vector.load %arg4[%c0_5, %c0_6] : memref<1x128xbf16, #tpu.memory_space<vmem>>, vector<1x128xbf16>
    %5 = arith.extf %4 : vector<1x128xbf16> to vector<1x128xf32>
    %cst = arith.constant dense<0.000000e+00> : vector<512x128xf32>
    %6 = tpu.matmul %0, %3, %cst {dimension_numbers = #tpu.dot_dimension_numbers<[1], [0], [0], [1], [0, 0, 1, 1], [], []>} : vector<512x32xf32>, vector<32x128xf32>, vector<512x128xf32> -> vector<512x128xf32>
    %7 = vector.broadcast %1 : vector<512x1xf32> to vector<512x128xf32>
    %8 = vector.broadcast %5 : vector<1x128xf32> to vector<512x128xf32>
    %9 = arith.mulf %7, %8 : vector<512x128xf32>
    %10 = arith.addf %6, %9 : vector<512x128xf32>
    %c0_7 = arith.constant 0 : index
    %c0_8 = arith.constant 0 : index
    %11 = vector.load %arg5[%c0_7, %c0_8] : memref<1x128xf32, #tpu.memory_space<vmem>>, vector<1x128xf32>
    %12 = vector.broadcast %11 : vector<1x128xf32> to vector<512x128xf32>
    %13 = arith.addf %10, %12 : vector<512x128xf32>
    %cst_9 = arith.constant 0.000000e+00 : f32
    %14 = vector.broadcast %cst_9 : f32 to vector<512x128xf32>
    %15 = arith.maximumf %13, %14 : vector<512x128xf32>
    %c0_10 = arith.constant 0 : index
    %c0_11 = arith.constant 0 : index
    %16 = vector.load %arg6[%c0_10, %c0_11] : memref<128x128xbf16, #tpu.memory_space<vmem>>, vector<128x128xbf16>
    %17 = arith.extf %16 : vector<128x128xbf16> to vector<128x128xf32>
    %cst_12 = arith.constant dense<0.000000e+00> : vector<512x128xf32>
    %18 = tpu.matmul %15, %17, %cst_12 {dimension_numbers = #tpu.dot_dimension_numbers<[1], [0], [0], [1], [0, 0, 1, 1], [], []>} : vector<512x128xf32>, vector<128x128xf32>, vector<512x128xf32> -> vector<512x128xf32>
    %c0_13 = arith.constant 0 : index
    %c0_14 = arith.constant 0 : index
    %19 = vector.load %arg7[%c0_13, %c0_14] : memref<1x128xf32, #tpu.memory_space<vmem>>, vector<1x128xf32>
    %20 = vector.broadcast %19 : vector<1x128xf32> to vector<512x128xf32>
    %21 = arith.addf %18, %20 : vector<512x128xf32>
    %cst_15 = arith.constant 0.000000e+00 : f32
    %22 = vector.broadcast %cst_15 : f32 to vector<512x128xf32>
    %23 = arith.maximumf %21, %22 : vector<512x128xf32>
    %c0_16 = arith.constant 0 : index
    %c0_17 = arith.constant 0 : index
    %24 = vector.load %arg8[%c0_16, %c0_17] : memref<128x128xbf16, #tpu.memory_space<vmem>>, vector<128x128xbf16>
    %25 = arith.extf %24 : vector<128x128xbf16> to vector<128x128xf32>
    %cst_18 = arith.constant dense<0.000000e+00> : vector<512x128xf32>
    %26 = tpu.matmul %23, %25, %cst_18 {dimension_numbers = #tpu.dot_dimension_numbers<[1], [0], [0], [1], [0, 0, 1, 1], [], []>} : vector<512x128xf32>, vector<128x128xf32>, vector<512x128xf32> -> vector<512x128xf32>
    %c0_19 = arith.constant 0 : index
    %c0_20 = arith.constant 0 : index
    %27 = vector.load %arg9[%c0_19, %c0_20] : memref<1x128xf32, #tpu.memory_space<vmem>>, vector<1x128xf32>
    %28 = vector.broadcast %27 : vector<1x128xf32> to vector<512x128xf32>
    %29 = arith.addf %26, %28 : vector<512x128xf32>
    %c0_21 = arith.constant 0 : index
    %c0_22 = arith.constant 0 : index
    %30 = vector.load %arg10[%c0_21, %c0_22] : memref<512x128xf32, #tpu.memory_space<vmem>>, vector<512x128xf32>
    tpu.vector_store %arg10[%c0_21, %c0_22], %29 {strides = array<i32>} : memref<512x128xf32, #tpu.memory_space<vmem>>, vector<512x128xf32>,
    return
  }
  func.func @transform_0(%arg0: i32) -> (i32, i32) {
    %c0_i32 = arith.constant 0 : i32
    %c0_i32_0 = arith.constant 0 : i32
    return %arg0, %c0_i32 : i32, i32
  }
  func.func @transform_1(%arg0: i32) -> (i32, i32) {
    %c0_i32 = arith.constant 0 : i32
    %c0_i32_0 = arith.constant 0 : i32
    return %arg0, %c0_i32 : i32, i32
  }
  func.func @transform_2(%arg0: i32) -> (i32, i32) {
    %c0_i32 = arith.constant 0 : i32
    %c0_i32_0 = arith.constant 0 : i32
    %c0_i32_1 = arith.constant 0 : i32
    return %c0_i32, %c0_i32_0 : i32, i32
  }
  func.func @transform_3(%arg0: i32) -> (i32, i32) {
    %c0_i32 = arith.constant 0 : i32
    %c0_i32_0 = arith.constant 0 : i32
    %c0_i32_1 = arith.constant 0 : i32
    return %c0_i32, %c0_i32_0 : i32, i32
  }
  func.func @transform_4(%arg0: i32) -> (i32, i32) {
    %c0_i32 = arith.constant 0 : i32
    %c0_i32_0 = arith.constant 0 : i32
    %c0_i32_1 = arith.constant 0 : i32
    return %c0_i32, %c0_i32_0 : i32, i32
  }
  func.func @transform_5(%arg0: i32) -> (i32, i32) {
    %c0_i32 = arith.constant 0 : i32
    %c0_i32_0 = arith.constant 0 : i32
    %c0_i32_1 = arith.constant 0 : i32
    return %c0_i32, %c0_i32_0 : i32, i32
  }
  func.func @transform_6(%arg0: i32) -> (i32, i32) {
    %c0_i32 = arith.constant 0 : i32
    %c0_i32_0 = arith.constant 0 : i32
    %c0_i32_1 = arith.constant 0 : i32
    return %c0_i32, %c0_i32_0 : i32, i32
  }
  func.func @transform_7(%arg0: i32) -> (i32, i32) {
    %c0_i32 = arith.constant 0 : i32
    %c0_i32_0 = arith.constant 0 : i32
    %c0_i32_1 = arith.constant 0 : i32
    return %c0_i32, %c0_i32_0 : i32, i32
  }
  func.func @transform_8(%arg0: i32) -> (i32, i32) {
    %c0_i32 = arith.constant 0 : i32
    %c0_i32_0 = arith.constant 0 : i32
    %c0_i32_1 = arith.constant 0 : i32
    return %c0_i32, %c0_i32_0 : i32, i32
  }
  func.func @transform_9(%arg0: i32) -> (i32, i32) {
    %c0_i32 = arith.constant 0 : i32
    %c0_i32_0 = arith.constant 0 : i32
    return %arg0, %c0_i32 : i32, i32
  }
}

</mosaic_0001>

<llo_original>
// kernel: tpu_custom_call.1
$region0: #{tpu_custom_call.1}
  #allocation0 [shape = 'u32[]', space=smem, size = 0x4, offset = 0x4, fixed_abs, tag = 'smem constant byte address 0x4 - core index']
  #allocation1 [shape = 'u32[144,128]{1,0:T(1,128)}', space=vmem, size = 0x12000, scoped, tag = 'internal scratch']
  %s0 = inlined_call_operand.vmem [shape: f32[1024,32], index: 0, kind: input, shape index: {}]
  %s1 = inlined_call_operand.vmem [shape: f32[1024,1], index: 1, kind: input, shape index: {}]
  %s2 = inlined_call_operand.vmem [shape: bf16[32,128], index: 2, kind: input, shape index: {}]
  %s3 = inlined_call_operand.vmem [shape: bf16[1,128], index: 3, kind: input, shape index: {}]
  %s4 = inlined_call_operand.vmem [shape: f32[1,128], index: 4, kind: input, shape index: {}]
  %s5 = inlined_call_operand.vmem [shape: bf16[128,128], index: 5, kind: input, shape index: {}]
  %s6 = inlined_call_operand.vmem [shape: f32[1,128], index: 6, kind: input, shape index: {}]
  %s7 = inlined_call_operand.vmem [shape: bf16[128,128], index: 7, kind: input, shape index: {}]
  %s8 = inlined_call_operand.vmem [shape: f32[1,128], index: 8, kind: input, shape index: {}]
  %s9 = inlined_call_operand.hbm [shape: f32[1024,128], index: 9, kind: output, shape index: {}]
  %s10 = sld [smem:[#allocation0]]
  $region69: #{tpu_custom_call.1} parent=0
    _
  %s12 = ssub.s32 1, %s10
  %s13 = scalar_select 0, %s12, %s10
  $region1: #{tpu_custom_call.1} parent=0
    #allocation2 [shape = 'u8[524288]{0}', space=vmem, size = 0x80000, scoped, tag = 'output window, operand 0']
    #allocation3 [shape = 's32[2]{0}', space=sflag, size = 0x8, scoped, tag = 'scoped memory for tpu_custom_call.1']
    %14 = vsyncpa [#allocation3], 0
    %s15 = scalar_lea.sflag [#allocation3], 1
    %16 = vsyncpa %s15, 0
    loop: start=0, step=1, limit=4
    $region2: #{tpu_custom_call.1} parent=1 // loop_pre_header
      _
    $region3: #{tpu_custom_call.1} parent=1 // loop_header
      %s18 = sphi 0, %s22
      %p19 = scmp.ge.s32.totalorder %s18, 4
      %s28 = sphi 0, %s30
      %s31 = sphi 0, %s28
      %s32 = sphi 0, %s31
      %s48 = sphi 0, %s32
      %s54 = sphi 0, %s56
      %s57 = sphi 0, %s54
      %s58 = sphi 0, %s57
      %s74 = sphi 0, %s58
      %s78 = sphi 0, %s78
      %s80 = sphi 0, %s78
      %s81 = sphi 0, %s80
      %s95 = sphi 0, %s81
      %s99 = sphi 0, %s99
      %s101 = sphi 0, %s99
      %s102 = sphi 0, %s101
      %s116 = sphi 0, %s102
      %s120 = sphi 0, %s120
      %s122 = sphi 0, %s120
      %s123 = sphi 0, %s122
      %s137 = sphi 0, %s123
      %s141 = sphi 0, %s141
      %s143 = sphi 0, %s141
      %s144 = sphi 0, %s143
      %s158 = sphi 0, %s144
      %s162 = sphi 0, %s162
      %s164 = sphi 0, %s162
      %s165 = sphi 0, %s164
      %s179 = sphi 0, %s165
      %s183 = sphi 0, %s183
      %s185 = sphi 0, %s183
      %s186 = sphi 0, %s185
      %s200 = sphi 0, %s186
      %s204 = sphi 0, %s204
      %s206 = sphi 0, %s204
      %s207 = sphi 0, %s206
      %s221 = sphi 0, %s207
      %s227 = sphi 0, %s229
      %s230 = sphi 0, %s227
      %s231 = sphi 0, %s230
      %s247 = sphi 0, %s231
    $region4: #{tpu_custom_call.1} parent=1 // loop_header_branch
      %21 = sbr.rel (%p19) target = $region8
    $region5: #{tpu_custom_call.1} parent=1 // loop_body
      %s23 = ssub.s32 %s18, 1
      %s24 = ssub.s32 %s18, 2
      %s25 = sadd.s32 %s18, 1
      %s26 = ssub.s32 %s18, %s25
      %p27 = scmp.eq.s32.totalorder %s26, 0
      %s29 = sadd.s32 %s28, 1
      %s30 = scalar_select %p27, %s28, %s29
      %p33 = pneg %p27
      %p34 = scmp.eq.s32.totalorder %s18, 1
      %p35 = por %p33, %p34
      %p36 = scmp.ne.s32.totalorder %s28, %s31
      %p37 = scmp.eq.s32.totalorder %s18, 0
      %p38 = por %p36, %p37
      %p39 = scmp.ne.s32.totalorder %s28, %s31
      %p40 = scmp.eq.s32.totalorder %s23, 1
      %p41 = por %p39, %p40
      %p42 = scmp.ne.s32.totalorder %s31, %s32
      %p43 = scmp.eq.s32.totalorder %s23, 0
      %p44 = por %p42, %p43
      %p45 = scmp.ne.s32.totalorder %s31, %s32
      %p46 = scmp.eq.s32.totalorder %s24, 1
      %p47 = por %p45, %p46
      %p49 = scmp.ne.s32.totalorder %s32, %s48
      %p50 = scmp.eq.s32.totalorder %s24, 0
      %p51 = por %p49, %p50
      %s52 = ssub.s32 %s18, %s25
      %p53 = scmp.eq.s32.totalorder %s52, 0
      %s55 = sadd.s32 %s54, 1
      %s56 = scalar_select %p53, %s54, %s55
      %p59 = pneg %p53
      %p60 = scmp.eq.s32.totalorder %s18, 1
      %p61 = por %p59, %p60
      %p62 = scmp.ne.s32.totalorder %s54, %s57
      %p63 = scmp.eq.s32.totalorder %s18, 0
      %p64 = por %p62, %p63
      %p65 = scmp.ne.s32.totalorder %s54, %s57
      %p66 = scmp.eq.s32.totalorder %s23, 1
      %p67 = por %p65, %p66
      %p68 = scmp.ne.s32.totalorder %s57, %s58
      %p69 = scmp.eq.s32.totalorder %s23, 0
      %p70 = por %p68, %p69
      %p71 = scmp.ne.s32.totalorder %s57, %s58
      %p72 = scmp.eq.s32.totalorder %s24, 1
      %p73 = por %p71, %p72
      %p75 = scmp.ne.s32.totalorder %s58, %s74
      %p76 = scmp.eq.s32.totalorder %s24, 0
      %p77 = por %p75, %p76
      %s79 = sadd.s32 %s78, 1
      %p82 = scmp.eq.s32.totalorder %s18, 1
      %p83 = scmp.ne.s32.totalorder %s78, %s80
      %p84 = scmp.eq.s32.totalorder %s18, 0
      %p85 = por %p83, %p84
      %p86 = scmp.ne.s32.totalorder %s78, %s80
      %p87 = scmp.eq.s32.totalorder %s23, 1
      %p88 = por %p86, %p87
      %p89 = scmp.ne.s32.totalorder %s80, %s81
      %p90 = scmp.eq.s32.totalorder %s23, 0
      %p91 = por %p89, %p90
      %p92 = scmp.ne.s32.totalorder %s80, %s81
      %p93 = scmp.eq.s32.totalorder %s24, 1
      %p94 = por %p92, %p93
      %p96 = scmp.ne.s32.totalorder %s81, %s95
      %p97 = scmp.eq.s32.totalorder %s24, 0
      %p98 = por %p96, %p97
      %s100 = sadd.s32 %s99, 1
      %p103 = scmp.eq.s32.totalorder %s18, 1
      %p104 = scmp.ne.s32.totalorder %s99, %s101
      %p105 = scmp.eq.s32.totalorder %s18, 0
      %p106 = por %p104, %p105
      %p107 = scmp.ne.s32.totalorder %s99, %s101
      %p108 = scmp.eq.s32.totalorder %s23, 1
      %p109 = por %p107, %p108
      %p110 = scmp.ne.s32.totalorder %s101, %s102
      %p111 = scmp.eq.s32.totalorder %s23, 0
      %p112 = por %p110, %p111
      %p113 = scmp.ne.s32.totalorder %s101, %s102
      %p114 = scmp.eq.s32.totalorder %s24, 1
      %p115 = por %p113, %p114
      %p117 = scmp.ne.s32.totalorder %s102, %s116
      %p118 = scmp.eq.s32.totalorder %s24, 0
      %p119 = por %p117, %p118
      %s121 = sadd.s32 %s120, 1
      %p124 = scmp.eq.s32.totalorder %s18, 1
      %p125 = scmp.ne.s32.totalorder %s120, %s122
      %p126 = scmp.eq.s32.totalorder %s18, 0
      %p127 = por %p125, %p126
      %p128 = scmp.ne.s32.totalorder %s120, %s122
      %p129 = scmp.eq.s32.totalorder %s23, 1
      %p130 = por %p128, %p129
      %p131 = scmp.ne.s32.totalorder %s122, %s123
      %p132 = scmp.eq.s32.totalorder %s23, 0
      %p133 = por %p131, %p132
      %p134 = scmp.ne.s32.totalorder %s122, %s123
      %p135 = scmp.eq.s32.totalorder %s24, 1
      %p136 = por %p134, %p135
      %p138 = scmp.ne.s32.totalorder %s123, %s137
      %p139 = scmp.eq.s32.totalorder %s24, 0
      %p140 = por %p138, %p139
      %s142 = sadd.s32 %s141, 1
      %p145 = scmp.eq.s32.totalorder %s18, 1
      %p146 = scmp.ne.s32.totalorder %s141, %s143
      %p147 = scmp.eq.s32.totalorder %s18, 0
      %p148 = por %p146, %p147
      %p149 = scmp.ne.s32.totalorder %s141, %s143
      %p150 = scmp.eq.s32.totalorder %s23, 1
      %p151 = por %p149, %p150
      %p152 = scmp.ne.s32.totalorder %s143, %s144
      %p153 = scmp.eq.s32.totalorder %s23, 0
      %p154 = por %p152, %p153
      %p155 = scmp.ne.s32.totalorder %s143, %s144
      %p156 = scmp.eq.s32.totalorder %s24, 1
      %p157 = por %p155, %p156
      %p159 = scmp.ne.s32.totalorder %s144, %s158
      %p160 = scmp.eq.s32.totalorder %s24, 0
      %p161 = por %p159, %p160
      %s163 = sadd.s32 %s162, 1
      %p166 = scmp.eq.s32.totalorder %s18, 1
      %p167 = scmp.ne.s32.totalorder %s162, %s164
      %p168 = scmp.eq.s32.totalorder %s18, 0
      %p169 = por %p167, %p168
      %p170 = scmp.ne.s32.totalorder %s162, %s164
      %p171 = scmp.eq.s32.totalorder %s23, 1
      %p172 = por %p170, %p171
      %p173 = scmp.ne.s32.totalorder %s164, %s165
      %p174 = scmp.eq.s32.totalorder %s23, 0
      %p175 = por %p173, %p174
      %p176 = scmp.ne.s32.totalorder %s164, %s165
      %p177 = scmp.eq.s32.totalorder %s24, 1
      %p178 = por %p176, %p177
      %p180 = scmp.ne.s32.totalorder %s165, %s179
      %p181 = scmp.eq.s32.totalorder %s24, 0
      %p182 = por %p180, %p181
      %s184 = sadd.s32 %s183, 1
      %p187 = scmp.eq.s32.totalorder %s18, 1
      %p188 = scmp.ne.s32.totalorder %s183, %s185
      %p189 = scmp.eq.s32.totalorder %s18, 0
      %p190 = por %p188, %p189
      %p191 = scmp.ne.s32.totalorder %s183, %s185
      %p192 = scmp.eq.s32.totalorder %s23, 1
      %p193 = por %p191, %p192
      %p194 = scmp.ne.s32.totalorder %s185, %s186
      %p195 = scmp.eq.s32.totalorder %s23, 0
      %p196 = por %p194, %p195
      %p197 = scmp.ne.s32.totalorder %s185, %s186
      %p198 = scmp.eq.s32.totalorder %s24, 1
      %p199 = por %p197, %p198
      %p201 = scmp.ne.s32.totalorder %s186, %s200
      %p202 = scmp.eq.s32.totalorder %s24, 0
      %p203 = por %p201, %p202
      %s205 = sadd.s32 %s204, 1
      %p208 = scmp.eq.s32.totalorder %s18, 1
      %p209 = scmp.ne.s32.totalorder %s204, %s206
      %p210 = scmp.eq.s32.totalorder %s18, 0
      %p211 = por %p209, %p210
      %p212 = scmp.ne.s32.totalorder %s204, %s206
      %p213 = scmp.eq.s32.totalorder %s23, 1
      %p214 = por %p212, %p213
      %p215 = scmp.ne.s32.totalorder %s206, %s207
      %p216 = scmp.eq.s32.totalorder %s23, 0
      %p217 = por %p215, %p216
      %p218 = scmp.ne.s32.totalorder %s206, %s207
      %p219 = scmp.eq.s32.totalorder %s24, 1
      %p220 = por %p218, %p219
      %p222 = scmp.ne.s32.totalorder %s207, %s221
      %p223 = scmp.eq.s32.totalorder %s24, 0
      %p224 = por %p222, %p223
      %s225 = ssub.s32 %s18, %s25
      %p226 = scmp.eq.s32.totalorder %s225, 0
      %s228 = sadd.s32 %s227, 1
      %s229 = scalar_select %p226, %s227, %s228
      %p232 = pneg %p226
      %p233 = scmp.eq.s32.totalorder %s18, 1
      %p234 = por %p232, %p233
      %p235 = scmp.ne.s32.totalorder %s227, %s230
      %p236 = scmp.eq.s32.totalorder %s18, 0
      %p237 = por %p235, %p236
      %p238 = scmp.ne.s32.totalorder %s227, %s230
      %p239 = scmp.eq.s32.totalorder %s23, 1
      %p240 = por %p238, %p239
      %p241 = scmp.ne.s32.totalorder %s230, %s231
      %p242 = scmp.eq.s32.totalorder %s23, 0
      %p243 = por %p241, %p242
      %p244 = scmp.ne.s32.totalorder %s230, %s231
      %p245 = scmp.eq.s32.totalorder %s24, 1
      %p246 = por %p244, %p245
      %p248 = scmp.ne.s32.totalorder %s231, %s247
      %p249 = scmp.eq.s32.totalorder %s24, 0
      %p250 = por %p248, %p249
      %p251 = scmp.le.s32.totalorder 1, %s18
      %p252 = scmp.lt.s32.totalorder %s18, 3
      %p253 = pnand %p251, %p252
      %p254 = pneg %p253
      // Predicated region
      $region9: #{tpu_custom_call.1} parent=5 // pred_check
        _
      $region10: #{tpu_custom_call.1} parent=5 // pred_check_branch
        %256 = sbr.rel (%p253) target = $region12
      $region11: #{tpu_custom_call.1} parent=5 // pred_region
        %s257 = ssub.s32 %s18, 1
        // Predicated region
        $region13: #{tpu_custom_call.1} parent=11 // pred_check
          %p258 = pneg %p91
        $region14: #{tpu_custom_call.1} parent=11 // pred_check_branch
          %260 = sbr.rel (%p258) target = $region16
        $region15: #{tpu_custom_call.1} parent=11 // pred_region
          _
        $region16: #{tpu_custom_call.1} parent=11 // pred_fallthru
          _
        // Predicated region
        $region17: #{tpu_custom_call.1} parent=11 // pred_check
          %p261 = pneg %p112
        $region18: #{tpu_custom_call.1} parent=11 // pred_check_branch
          %263 = sbr.rel (%p261) target = $region20
        $region19: #{tpu_custom_call.1} parent=11 // pred_region
          _
        $region20: #{tpu_custom_call.1} parent=11 // pred_fallthru
          _
        // Predicated region
        $region21: #{tpu_custom_call.1} parent=11 // pred_check
          %p264 = pneg %p133
        $region22: #{tpu_custom_call.1} parent=11 // pred_check_branch
          %266 = sbr.rel (%p264) target = $region24
        $region23: #{tpu_custom_call.1} parent=11 // pred_region
          _
        $region24: #{tpu_custom_call.1} parent=11 // pred_fallthru
          _
        // Predicated region
        $region25: #{tpu_custom_call.1} parent=11 // pred_check
          %p267 = pneg %p154
        $region26: #{tpu_custom_call.1} parent=11 // pred_check_branch
          %269 = sbr.rel (%p267) target = $region28
        $region27: #{tpu_custom_call.1} parent=11 // pred_region
          _
        $region28: #{tpu_custom_call.1} parent=11 // pred_fallthru
          _
        // Predicated region
        $region29: #{tpu_custom_call.1} parent=11 // pred_check
          %p270 = pneg %p175
        $region30: #{tpu_custom_call.1} parent=11 // pred_check_branch
          %272 = sbr.rel (%p270) target = $region32
        $region31: #{tpu_custom_call.1} parent=11 // pred_region
          _
        $region32: #{tpu_custom_call.1} parent=11 // pred_fallthru
          _
        // Predicated region
        $region33: #{tpu_custom_call.1} parent=11 // pred_check
          %p273 = pneg %p196
        $region34: #{tpu_custom_call.1} parent=11 // pred_check_branch
          %275 = sbr.rel (%p273) target = $region36
        $region35: #{tpu_custom_call.1} parent=11 // pred_region
          _
        $region36: #{tpu_custom_call.1} parent=11 // pred_fallthru
          _
        // Predicated region
        $region37: #{tpu_custom_call.1} parent=11 // pred_check
          %p276 = pneg %p217
        $region38: #{tpu_custom_call.1} parent=11 // pred_check_branch
          %278 = sbr.rel (%p276) target = $region40
        $region39: #{tpu_custom_call.1} parent=11 // pred_region
          _
        $region40: #{tpu_custom_call.1} parent=11 // pred_fallthru
          _
      $region12: #{tpu_custom_call.1} parent=5 // pred_fallthru
        _
      %p279 = scmp.lt.s32.totalorder %s18, 2
      // Predicated region
      $region41: #{tpu_custom_call.1} parent=5 // pred_check
        %p280 = pneg %p279
      $region42: #{tpu_custom_call.1} parent=5 // pred_check_branch
        %282 = sbr.rel (%p280) target = $region44
      $region43: #{tpu_custom_call.1} parent=5 // pred_region
        // Predicated region
        $region45: #{tpu_custom_call.1} parent=43 // pred_check
          %p283 = pneg %p38
        $region46: #{tpu_custom_call.1} parent=43 // pred_check_branch
          %285 = sbr.rel (%p283) target = $region48
        $region47: #{tpu_custom_call.1} parent=43 // pred_region
          %s286 = smul.u32 64, %s18
          %p287 = scmp.lt.s32.totalorder %s286, 127
          %s288 = scalar_select %p287, %s286, 127
          %s289 = smul.addr %s288, 8
          %s290 = scalar_lea.vmem %s0, %s289
          %s291 = smul.u32 64, %s18
        $region48: #{tpu_custom_call.1} parent=43 // pred_fallthru
          _
        // Predicated region
        $region49: #{tpu_custom_call.1} parent=43 // pred_check
          %p292 = pneg %p64
        $region50: #{tpu_custom_call.1} parent=43 // pred_check_branch
          %294 = sbr.rel (%p292) target = $region52
        $region51: #{tpu_custom_call.1} parent=43 // pred_region
          %s295 = smul.u32 64, %s18
          %p296 = scmp.lt.s32.totalorder %s295, 127
          %s297 = scalar_select %p296, %s295, 127
          %s298 = smul.addr %s297, 8
          %s299 = scalar_lea.vmem %s1, %s298
          %s300 = smul.u32 64, %s18
        $region52: #{tpu_custom_call.1} parent=43 // pred_fallthru
          _
      $region44: #{tpu_custom_call.1} parent=5 // pred_fallthru
        _
      %p301 = scmp.le.s32.totalorder 1, %s18
      %p302 = scmp.lt.s32.totalorder %s18, 3
      %p303 = pnand %p301, %p302
      %p304 = pneg %p303
      // Predicated region
      $region53: #{tpu_custom_call.1} parent=5 // pred_check
        _
      $region54: #{tpu_custom_call.1} parent=5 // pred_check_branch
        %306 = sbr.rel (%p303) target = $region56
      $region55: #{tpu_custom_call.1} parent=5 // pred_region
        %s307 = ssub.s32 %s18, 1
        %s308 = smul.u32 64, %s23
        %p309 = scmp.lt.s32.totalorder %s308, 127
        %s310 = scalar_select %p309, %s308, 127
        %s311 = smul.addr %s310, 8
        %s312 = scalar_lea.vmem %s0, %s311
        %p313 = pneg %p44
        %p314 = pneg %p41
        %s315 = smul.u32 64, %s23
        %p316 = scmp.lt.s32.totalorder %s315, 127
        %s317 = scalar_select %p316, %s315, 127
        %s318 = smul.addr %s317, 8
        %s319 = scalar_lea.vmem %s1, %s318
        %p320 = pneg %p70
        %p321 = pneg %p67
        %p322 = pneg %p91
        %p323 = pneg %p88
        %p324 = pneg %p112
        %p325 = pneg %p109
        %p326 = pneg %p133
        %p327 = pneg %p130
        %p328 = pneg %p154
        %p329 = pneg %p151
        %p330 = pneg %p175
        %p331 = pneg %p172
        %p332 = pneg %p196
        %p333 = pneg %p193
        %p334 = pneg %p217
        %p335 = pneg %p214
        %p336 = pneg %p243
        %p337 = pneg %p240
        %s338 = sand.u32 %s230, 1
        %s339 = scalar_lea.sflag [#allocation3], %s338
        %s340 = sand.u32 %s230, 1
        %s341 = smul.addr %s340, 512
        %s342 = scalar_lea.vmem [#allocation2], %s341
        %s343 = smul.u32 64, %s23
        %p344 = scmp.lt.s32.totalorder %s343, 127
        %s345 = scalar_select %p344, %s343, 127
        %s346 = smul.addr %s345, 8
        %s347 = scalar_lea.vmem %s0, %s346
        %s348 = smul.u32 64, %s23
        %s349 = smul.u32 64, %s23
        %p350 = scmp.lt.s32.totalorder %s349, 127
        %s351 = scalar_select %p350, %s349, 127
        %s352 = smul.addr %s351, 8
        %s353 = scalar_lea.vmem %s1, %s352
        %s354 = smul.u32 64, %s23
        %s355 = smul.u32 64, %s23
        %v356 = vld [vmem:[%s347] sm:$0xff]
        %v357 = vld [vmem:[%s347 + $0x8] sm:$0xff]
        %v358 = vld [vmem:[%s347 + $0x10] sm:$0xff]
        %v359 = vld [vmem:[%s347 + $0x18] sm:$0xff]
        %v360 = vld [vmem:[%s347 + $0x20] sm:$0xff]
        %v361 = vld [vmem:[%s347 + $0x28] sm:$0xff]
        %v362 = vld [vmem:[%s347 + $0x30] sm:$0xff]
        %v363 = vld [vmem:[%s347 + $0x38] sm:$0xff]
        %v364 = vld [vmem:[%s347 + $0x40] sm:$0xff]
        %v365 = vld [vmem:[%s347 + $0x48] sm:$0xff]
        %v366 = vld [vmem:[%s347 + $0x50] sm:$0xff]
        %v367 = vld [vmem:[%s347 + $0x58] sm:$0xff]
        %v368 = vld [vmem:[%s347 + $0x60] sm:$0xff]
        %v369 = vld [vmem:[%s347 + $0x68] sm:$0xff]
        %v370 = vld [vmem:[%s347 + $0x70] sm:$0xff]
        %v371 = vld [vmem:[%s347 + $0x78] sm:$0xff]
        %v372 = vld [vmem:[%s347 + $0x80] sm:$0xff]
        %v373 = vld [vmem:[%s347 + $0x88] sm:$0xff]
        %v374 = vld [vmem:[%s347 + $0x90] sm:$0xff]
        %v375 = vld [vmem:[%s347 + $0x98] sm:$0xff]
        %v376 = vld [vmem:[%s347 + $0xa0] sm:$0xff]
        %v377 = vld [vmem:[%s347 + $0xa8] sm:$0xff]
        %v378 = vld [vmem:[%s347 + $0xb0] sm:$0xff]
        %v379 = vld [vmem:[%s347 + $0xb8] sm:$0xff]
        %v380 = vld [vmem:[%s347 + $0xc0] sm:$0xff]
        %v381 = vld [vmem:[%s347 + $0xc8] sm:$0xff]
        %v382 = vld [vmem:[%s347 + $0xd0] sm:$0xff]
        %v383 = vld [vmem:[%s347 + $0xd8] sm:$0xff]
        %v384 = vld [vmem:[%s347 + $0xe0] sm:$0xff]
        %v385 = vld [vmem:[%s347 + $0xe8] sm:$0xff]
        %v386 = vld [vmem:[%s347 + $0xf0] sm:$0xff]
        %v387 = vld [vmem:[%s347 + $0xf8] sm:$0xff]
        %v388 = vld [vmem:[%s347 + $0x100] sm:$0xff]
        %v389 = vld [vmem:[%s347 + $0x108] sm:$0xff]
        %v390 = vld [vmem:[%s347 + $0x110] sm:$0xff]
        %v391 = vld [vmem:[%s347 + $0x118] sm:$0xff]
        %v392 = vld [vmem:[%s347 + $0x120] sm:$0xff]
        %v393 = vld [vmem:[%s347 + $0x128] sm:$0xff]
        %v394 = vld [vmem:[%s347 + $0x130] sm:$0xff]
        %v395 = vld [vmem:[%s347 + $0x138] sm:$0xff]
        %v396 = vld [vmem:[%s347 + $0x140] sm:$0xff]
        %v397 = vld [vmem:[%s347 + $0x148] sm:$0xff]
        %v398 = vld [vmem:[%s347 + $0x150] sm:$0xff]
        %v399 = vld [vmem:[%s347 + $0x158] sm:$0xff]
        %v400 = vld [vmem:[%s347 + $0x160] sm:$0xff]
        %v401 = vld [vmem:[%s347 + $0x168] sm:$0xff]
        %v402 = vld [vmem:[%s347 + $0x170] sm:$0xff]
        %v403 = vld [vmem:[%s347 + $0x178] sm:$0xff]
        %v404 = vld [vmem:[%s347 + $0x180] sm:$0xff]
        %v405 = vld [vmem:[%s347 + $0x188] sm:$0xff]
        %v406 = vld [vmem:[%s347 + $0x190] sm:$0xff]
        %v407 = vld [vmem:[%s347 + $0x198] sm:$0xff]
        %v408 = vld [vmem:[%s347 + $0x1a0] sm:$0xff]
        %v409 = vld [vmem:[%s347 + $0x1a8] sm:$0xff]
        %v410 = vld [vmem:[%s347 + $0x1b0] sm:$0xff]
        %v411 = vld [vmem:[%s347 + $0x1b8] sm:$0xff]
        %v412 = vld [vmem:[%s347 + $0x1c0] sm:$0xff]
        %v413 = vld [vmem:[%s347 + $0x1c8] sm:$0xff]
        %v414 = vld [vmem:[%s347 + $0x1d0] sm:$0xff]
        %v415 = vld [vmem:[%s347 + $0x1d8] sm:$0xff]
        %v416 = vld [vmem:[%s347 + $0x1e0] sm:$0xff]
        %v417 = vld [vmem:[%s347 + $0x1e8] sm:$0xff]
        %v418 = vld [vmem:[%s347 + $0x1f0] sm:$0xff]
        %v419 = vld [vmem:[%s347 + $0x1f8] sm:$0xff]
        %v420 = vld [vmem:[%s353] sm:$0xff]
        %v421 = vld [vmem:[%s353 + $0x8] sm:$0xff]
        %v422 = vld [vmem:[%s353 + $0x10] sm:$0xff]
        %v423 = vld [vmem:[%s353 + $0x18] sm:$0xff]
        %v424 = vld [vmem:[%s353 + $0x20] sm:$0xff]
        %v425 = vld [vmem:[%s353 + $0x28] sm:$0xff]
        %v426 = vld [vmem:[%s353 + $0x30] sm:$0xff]
        %v427 = vld [vmem:[%s353 + $0x38] sm:$0xff]
        %v428 = vld [vmem:[%s353 + $0x40] sm:$0xff]
        %v429 = vld [vmem:[%s353 + $0x48] sm:$0xff]
        %v430 = vld [vmem:[%s353 + $0x50] sm:$0xff]
        %v431 = vld [vmem:[%s353 + $0x58] sm:$0xff]
        %v432 = vld [vmem:[%s353 + $0x60] sm:$0xff]
        %v433 = vld [vmem:[%s353 + $0x68] sm:$0xff]
        %v434 = vld [vmem:[%s353 + $0x70] sm:$0xff]
        %v435 = vld [vmem:[%s353 + $0x78] sm:$0xff]
        %v436 = vld [vmem:[%s353 + $0x80] sm:$0xff]
        %v437 = vld [vmem:[%s353 + $0x88] sm:$0xff]
        %v438 = vld [vmem:[%s353 + $0x90] sm:$0xff]
        %v439 = vld [vmem:[%s353 + $0x98] sm:$0xff]
        %v440 = vld [vmem:[%s353 + $0xa0] sm:$0xff]
        %v441 = vld [vmem:[%s353 + $0xa8] sm:$0xff]
        %v442 = vld [vmem:[%s353 + $0xb0] sm:$0xff]
        %v443 = vld [vmem:[%s353 + $0xb8] sm:$0xff]
        %v444 = vld [vmem:[%s353 + $0xc0] sm:$0xff]
        %v445 = vld [vmem:[%s353 + $0xc8] sm:$0xff]
        %v446 = vld [vmem:[%s353 + $0xd0] sm:$0xff]
        %v447 = vld [vmem:[%s353 + $0xd8] sm:$0xff]
        %v448 = vld [vmem:[%s353 + $0xe0] sm:$0xff]
        %v449 = vld [vmem:[%s353 + $0xe8] sm:$0xff]
        %v450 = vld [vmem:[%s353 + $0xf0] sm:$0xff]
        %v451 = vld [vmem:[%s353 + $0xf8] sm:$0xff]
        %v452 = vld [vmem:[%s353 + $0x100] sm:$0xff]
        %v453 = vld [vmem:[%s353 + $0x108] sm:$0xff]
        %v454 = vld [vmem:[%s353 + $0x110] sm:$0xff]
        %v455 = vld [vmem:[%s353 + $0x118] sm:$0xff]
        %v456 = vld [vmem:[%s353 + $0x120] sm:$0xff]
        %v457 = vld [vmem:[%s353 + $0x128] sm:$0xff]
        %v458 = vld [vmem:[%s353 + $0x130] sm:$0xff]
        %v459 = vld [vmem:[%s353 + $0x138] sm:$0xff]
        %v460 = vld [vmem:[%s353 + $0x140] sm:$0xff]
        %v461 = vld [vmem:[%s353 + $0x148] sm:$0xff]
        %v462 = vld [vmem:[%s353 + $0x150] sm:$0xff]
        %v463 = vld [vmem:[%s353 + $0x158] sm:$0xff]
        %v464 = vld [vmem:[%s353 + $0x160] sm:$0xff]
        %v465 = vld [vmem:[%s353 + $0x168] sm:$0xff]
        %v466 = vld [vmem:[%s353 + $0x170] sm:$0xff]
        %v467 = vld [vmem:[%s353 + $0x178] sm:$0xff]
        %v468 = vld [vmem:[%s353 + $0x180] sm:$0xff]
        %v469 = vld [vmem:[%s353 + $0x188] sm:$0xff]
        %v470 = vld [vmem:[%s353 + $0x190] sm:$0xff]
        %v471 = vld [vmem:[%s353 + $0x198] sm:$0xff]
        %v472 = vld [vmem:[%s353 + $0x1a0] sm:$0xff]
        %v473 = vld [vmem:[%s353 + $0x1a8] sm:$0xff]
        %v474 = vld [vmem:[%s353 + $0x1b0] sm:$0xff]
        %v475 = vld [vmem:[%s353 + $0x1b8] sm:$0xff]
        %v476 = vld [vmem:[%s353 + $0x1c0] sm:$0xff]
        %v477 = vld [vmem:[%s353 + $0x1c8] sm:$0xff]
        %v478 = vld [vmem:[%s353 + $0x1d0] sm:$0xff]
        %v479 = vld [vmem:[%s353 + $0x1d8] sm:$0xff]
        %v480 = vld [vmem:[%s353 + $0x1e0] sm:$0xff]
        %v481 = vld [vmem:[%s353 + $0x1e8] sm:$0xff]
        %v482 = vld [vmem:[%s353 + $0x1f0] sm:$0xff]
        %v483 = vld [vmem:[%s353 + $0x1f8] sm:$0xff]
        %v484 = vld [vmem:[%s2] sm:$0xf]
        %v485 = vld [vmem:[%s2 + $0x4] sm:$0xf]
        %v486 = vld [vmem:[%s2 + $0x8] sm:$0xf]
        %v487 = vld [vmem:[%s2 + $0xc] sm:$0xf]
        %v488 = vunpack.c.l.bf16 %v484
        %v489 = vunpack.c.l.bf16 %v485
        %v490 = vunpack.c.l.bf16 %v486
        %v491 = vunpack.c.l.bf16 %v487
        %v492 = vld [vmem:[%s3] sm:$0x1]
        %v493 = vunpack.c.l.bf16 %v492
        %495 = vset.pattern.permute.xlu0 0
        %496 = vperm.xlu0 %495, %v420
        %v497 = vpop.permute.xlu0 %496
        %500 = vset.pattern.permute.xlu0 0
        %501 = vperm.xlu0 %500, %v421
        %v502 = vpop.permute.xlu0 %501
        %505 = vset.pattern.permute.xlu0 0
        %506 = vperm.xlu0 %505, %v422
        %v507 = vpop.permute.xlu0 %506
        %510 = vset.pattern.permute.xlu0 0
        %511 = vperm.xlu0 %510, %v423
        %v512 = vpop.permute.xlu0 %511
        %515 = vset.pattern.permute.xlu0 0
        %516 = vperm.xlu0 %515, %v424
        %v517 = vpop.permute.xlu0 %516
        %520 = vset.pattern.permute.xlu0 0
        %521 = vperm.xlu0 %520, %v425
        %v522 = vpop.permute.xlu0 %521
        %525 = vset.pattern.permute.xlu0 0
        %526 = vperm.xlu0 %525, %v426
        %v527 = vpop.permute.xlu0 %526
        %530 = vset.pattern.permute.xlu0 0
        %531 = vperm.xlu0 %530, %v427
        %v532 = vpop.permute.xlu0 %531
        %535 = vset.pattern.permute.xlu0 0
        %536 = vperm.xlu0 %535, %v428
        %v537 = vpop.permute.xlu0 %536
        %540 = vset.pattern.permute.xlu0 0
        %541 = vperm.xlu0 %540, %v429
        %v542 = vpop.permute.xlu0 %541
        %545 = vset.pattern.permute.xlu0 0
        %546 = vperm.xlu0 %545, %v430
        %v547 = vpop.permute.xlu0 %546
        %550 = vset.pattern.permute.xlu0 0
        %551 = vperm.xlu0 %550, %v431
        %v552 = vpop.permute.xlu0 %551
        %555 = vset.pattern.permute.xlu0 0
        %556 = vperm.xlu0 %555, %v432
        %v557 = vpop.permute.xlu0 %556
        %560 = vset.pattern.permute.xlu0 0
        %561 = vperm.xlu0 %560, %v433
        %v562 = vpop.permute.xlu0 %561
        %565 = vset.pattern.permute.xlu0 0
        %566 = vperm.xlu0 %565, %v434
        %v567 = vpop.permute.xlu0 %566
        %570 = vset.pattern.permute.xlu0 0
        %571 = vperm.xlu0 %570, %v435
        %v572 = vpop.permute.xlu0 %571
        %575 = vset.pattern.permute.xlu0 0
        %576 = vperm.xlu0 %575, %v436
        %v577 = vpop.permute.xlu0 %576
        %580 = vset.pattern.permute.xlu0 0
        %581 = vperm.xlu0 %580, %v437
        %v582 = vpop.permute.xlu0 %581
        %585 = vset.pattern.permute.xlu0 0
        %586 = vperm.xlu0 %585, %v438
        %v587 = vpop.permute.xlu0 %586
        %590 = vset.pattern.permute.xlu0 0
        %591 = vperm.xlu0 %590, %v439
        %v592 = vpop.permute.xlu0 %591
        %595 = vset.pattern.permute.xlu0 0
        %596 = vperm.xlu0 %595, %v440
        %v597 = vpop.permute.xlu0 %596
        %600 = vset.pattern.permute.xlu0 0
        %601 = vperm.xlu0 %600, %v441
        %v602 = vpop.permute.xlu0 %601
        %605 = vset.pattern.permute.xlu0 0
        %606 = vperm.xlu0 %605, %v442
        %v607 = vpop.permute.xlu0 %606
        %610 = vset.pattern.permute.xlu0 0
        %611 = vperm.xlu0 %610, %v443
        %v612 = vpop.permute.xlu0 %611
        %615 = vset.pattern.permute.xlu0 0
        %616 = vperm.xlu0 %615, %v444
        %v617 = vpop.permute.xlu0 %616
        %620 = vset.pattern.permute.xlu0 0
        %621 = vperm.xlu0 %620, %v445
        %v622 = vpop.permute.xlu0 %621
        %625 = vset.pattern.permute.xlu0 0
        %626 = vperm.xlu0 %625, %v446
        %v627 = vpop.permute.xlu0 %626
        %630 = vset.pattern.permute.xlu0 0
        %631 = vperm.xlu0 %630, %v447
        %v632 = vpop.permute.xlu0 %631
        %635 = vset.pattern.permute.xlu0 0
        %636 = vperm.xlu0 %635, %v448
        %v637 = vpop.permute.xlu0 %636
        %640 = vset.pattern.permute.xlu0 0
        %641 = vperm.xlu0 %640, %v449
        %v642 = vpop.permute.xlu0 %641
        %645 = vset.pattern.permute.xlu0 0
        %646 = vperm.xlu0 %645, %v450
        %v647 = vpop.permute.xlu0 %646
        %650 = vset.pattern.permute.xlu0 0
        %651 = vperm.xlu0 %650, %v451
        %v652 = vpop.permute.xlu0 %651
        %655 = vset.pattern.permute.xlu0 0
        %656 = vperm.xlu0 %655, %v452
        %v657 = vpop.permute.xlu0 %656
        %660 = vset.pattern.permute.xlu0 0
        %661 = vperm.xlu0 %660, %v453
        %v662 = vpop.permute.xlu0 %661
        %665 = vset.pattern.permute.xlu0 0
        %666 = vperm.xlu0 %665, %v454
        %v667 = vpop.permute.xlu0 %666
        %670 = vset.pattern.permute.xlu0 0
        %671 = vperm.xlu0 %670, %v455
        %v672 = vpop.permute.xlu0 %671
        %675 = vset.pattern.permute.xlu0 0
        %676 = vperm.xlu0 %675, %v456
        %v677 = vpop.permute.xlu0 %676
        %680 = vset.pattern.permute.xlu0 0
        %681 = vperm.xlu0 %680, %v457
        %v682 = vpop.permute.xlu0 %681
        %685 = vset.pattern.permute.xlu0 0
        %686 = vperm.xlu0 %685, %v458
        %v687 = vpop.permute.xlu0 %686
        %690 = vset.pattern.permute.xlu0 0
        %691 = vperm.xlu0 %690, %v459
        %v692 = vpop.permute.xlu0 %691
        %695 = vset.pattern.permute.xlu0 0
        %696 = vperm.xlu0 %695, %v460
        %v697 = vpop.permute.xlu0 %696
        %700 = vset.pattern.permute.xlu0 0
        %701 = vperm.xlu0 %700, %v461
        %v702 = vpop.permute.xlu0 %701
        %705 = vset.pattern.permute.xlu0 0
        %706 = vperm.xlu0 %705, %v462
        %v707 = vpop.permute.xlu0 %706
        %710 = vset.pattern.permute.xlu0 0
        %711 = vperm.xlu0 %710, %v463
        %v712 = vpop.permute.xlu0 %711
        %715 = vset.pattern.permute.xlu0 0
        %716 = vperm.xlu0 %715, %v464
        %v717 = vpop.permute.xlu0 %716
        %720 = vset.pattern.permute.xlu0 0
        %721 = vperm.xlu0 %720, %v465
        %v722 = vpop.permute.xlu0 %721
        %725 = vset.pattern.permute.xlu0 0
        %726 = vperm.xlu0 %725, %v466
        %v727 = vpop.permute.xlu0 %726
        %730 = vset.pattern.permute.xlu0 0
        %731 = vperm.xlu0 %730, %v467
        %v732 = vpop.permute.xlu0 %731
        %735 = vset.pattern.permute.xlu0 0
        %736 = vperm.xlu0 %735, %v468
        %v737 = vpop.permute.xlu0 %736
        %740 = vset.pattern.permute.xlu0 0
        %741 = vperm.xlu0 %740, %v469
        %v742 = vpop.permute.xlu0 %741
        %745 = vset.pattern.permute.xlu0 0
        %746 = vperm.xlu0 %745, %v470
        %v747 = vpop.permute.xlu0 %746
        %750 = vset.pattern.permute.xlu0 0
        %751 = vperm.xlu0 %750, %v471
        %v752 = vpop.permute.xlu0 %751
        %755 = vset.pattern.permute.xlu0 0
        %756 = vperm.xlu0 %755, %v472
        %v757 = vpop.permute.xlu0 %756
        %760 = vset.pattern.permute.xlu0 0
        %761 = vperm.xlu0 %760, %v473
        %v762 = vpop.permute.xlu0 %761
        %765 = vset.pattern.permute.xlu0 0
        %766 = vperm.xlu0 %765, %v474
        %v767 = vpop.permute.xlu0 %766
        %770 = vset.pattern.permute.xlu0 0
        %771 = vperm.xlu0 %770, %v475
        %v772 = vpop.permute.xlu0 %771
        %775 = vset.pattern.permute.xlu0 0
        %776 = vperm.xlu0 %775, %v476
        %v777 = vpop.permute.xlu0 %776
        %780 = vset.pattern.permute.xlu0 0
        %781 = vperm.xlu0 %780, %v477
        %v782 = vpop.permute.xlu0 %781
        %785 = vset.pattern.permute.xlu0 0
        %786 = vperm.xlu0 %785, %v478
        %v787 = vpop.permute.xlu0 %786
        %790 = vset.pattern.permute.xlu0 0
        %791 = vperm.xlu0 %790, %v479
        %v792 = vpop.permute.xlu0 %791
        %795 = vset.pattern.permute.xlu0 0
        %796 = vperm.xlu0 %795, %v480
        %v797 = vpop.permute.xlu0 %796
        %800 = vset.pattern.permute.xlu0 0
        %801 = vperm.xlu0 %800, %v481
        %v802 = vpop.permute.xlu0 %801
        %805 = vset.pattern.permute.xlu0 0
        %806 = vperm.xlu0 %805, %v482
        %v807 = vpop.permute.xlu0 %806
        %810 = vset.pattern.permute.xlu0 0
        %811 = vperm.xlu0 %810, %v483
        %v812 = vpop.permute.xlu0 %811
        %v814 = vlaneseq
        %v815 = vshrl.u32 %v814, 7
        %v816 = vsub.s32 0, %v815
        %v817 = vrot.slane %v493, %v816
        %v818 = vmul.f32 %v497, %v817
        %v819 = vmul.f32 %v502, %v817
        %v820 = vmul.f32 %v507, %v817
        %v821 = vmul.f32 %v512, %v817
        %v822 = vmul.f32 %v517, %v817
        %v823 = vmul.f32 %v522, %v817
        %v824 = vmul.f32 %v527, %v817
        %v825 = vmul.f32 %v532, %v817
        %v826 = vmul.f32 %v537, %v817
        %v827 = vmul.f32 %v542, %v817
        %v828 = vmul.f32 %v547, %v817
        %v829 = vmul.f32 %v552, %v817
        %v830 = vmul.f32 %v557, %v817
        %v831 = vmul.f32 %v562, %v817
        %v832 = vmul.f32 %v567, %v817
        %v833 = vmul.f32 %v572, %v817
        %v834 = vmul.f32 %v577, %v817
        %v835 = vmul.f32 %v582, %v817
        %v836 = vmul.f32 %v587, %v817
        %v837 = vmul.f32 %v592, %v817
        %v838 = vmul.f32 %v597, %v817
        %v839 = vmul.f32 %v602, %v817
        %v840 = vmul.f32 %v607, %v817
        %v841 = vmul.f32 %v612, %v817
        %v842 = vmul.f32 %v617, %v817
        %v843 = vmul.f32 %v622, %v817
        %v844 = vmul.f32 %v627, %v817
        %v845 = vmul.f32 %v632, %v817
        %v846 = vmul.f32 %v637, %v817
        %v847 = vmul.f32 %v642, %v817
        %v848 = vmul.f32 %v647, %v817
        %v849 = vmul.f32 %v652, %v817
        %v850 = vmul.f32 %v657, %v817
        %v851 = vmul.f32 %v662, %v817
        %v852 = vmul.f32 %v667, %v817
        %v853 = vmul.f32 %v672, %v817
        %v854 = vmul.f32 %v677, %v817
        %v855 = vmul.f32 %v682, %v817
        %v856 = vmul.f32 %v687, %v817
        %v857 = vmul.f32 %v692, %v817
        %v858 = vmul.f32 %v697, %v817
        %v859 = vmul.f32 %v702, %v817
        %v860 = vmul.f32 %v707, %v817
        %v861 = vmul.f32 %v712, %v817
        %v862 = vmul.f32 %v717, %v817
        %v863 = vmul.f32 %v722, %v817
        %v864 = vmul.f32 %v727, %v817
        %v865 = vmul.f32 %v732, %v817
        %v866 = vmul.f32 %v737, %v817
        %v867 = vmul.f32 %v742, %v817
        %v868 = vmul.f32 %v747, %v817
        %v869 = vmul.f32 %v752, %v817
        %v870 = vmul.f32 %v757, %v817
        %v871 = vmul.f32 %v762, %v817
        %v872 = vmul.f32 %v767, %v817
        %v873 = vmul.f32 %v772, %v817
        %v874 = vmul.f32 %v777, %v817
        %v875 = vmul.f32 %v782, %v817
        %v876 = vmul.f32 %v787, %v817
        %v877 = vmul.f32 %v792, %v817
        %v878 = vmul.f32 %v797, %v817
        %v879 = vmul.f32 %v802, %v817
        %v880 = vmul.f32 %v807, %v817
        %v881 = vmul.f32 %v812, %v817
        %vm882 = vcmask 261120
        %v884 = vsel %vm882, %v356, 0
        %v887 = vsel %vm882, %v357, 0
        %v890 = vsel %vm882, %v358, 0
        %v893 = vsel %vm882, %v359, 0
        %v896 = vsel %vm882, %v360, 0
        %v899 = vsel %vm882, %v361, 0
        %v902 = vsel %vm882, %v362, 0
        %v905 = vsel %vm882, %v363, 0
        %v908 = vsel %vm882, %v364, 0
        %v911 = vsel %vm882, %v365, 0
        %v914 = vsel %vm882, %v366, 0
        %v917 = vsel %vm882, %v367, 0
        %v920 = vsel %vm882, %v368, 0
        %v923 = vsel %vm882, %v369, 0
        %v926 = vsel %vm882, %v370, 0
        %v929 = vsel %vm882, %v371, 0
        %v932 = vsel %vm882, %v372, 0
        %v935 = vsel %vm882, %v373, 0
        %v938 = vsel %vm882, %v374, 0
        %v941 = vsel %vm882, %v375, 0
        %v944 = vsel %vm882, %v376, 0
        %v947 = vsel %vm882, %v377, 0
        %v950 = vsel %vm882, %v378, 0
        %v953 = vsel %vm882, %v379, 0
        %v956 = vsel %vm882, %v380, 0
        %v959 = vsel %vm882, %v381, 0
        %v962 = vsel %vm882, %v382, 0
        %v965 = vsel %vm882, %v383, 0
        %v968 = vsel %vm882, %v384, 0
        %v971 = vsel %vm882, %v385, 0
        %v974 = vsel %vm882, %v386, 0
        %v977 = vsel %vm882, %v387, 0
        %v980 = vsel %vm882, %v388, 0
        %v983 = vsel %vm882, %v389, 0
        %v986 = vsel %vm882, %v390, 0
        %v989 = vsel %vm882, %v391, 0
        %v992 = vsel %vm882, %v392, 0
        %v995 = vsel %vm882, %v393, 0
        %v998 = vsel %vm882, %v394, 0
        %v1001 = vsel %vm882, %v395, 0
        %v1004 = vsel %vm882, %v396, 0
        %v1007 = vsel %vm882, %v397, 0
        %v1010 = vsel %vm882, %v398, 0
        %v1013 = vsel %vm882, %v399, 0
        %v1016 = vsel %vm882, %v400, 0
        %v1019 = vsel %vm882, %v401, 0
        %v1022 = vsel %vm882, %v402, 0
        %v1025 = vsel %vm882, %v403, 0
        %v1028 = vsel %vm882, %v404, 0
        %v1031 = vsel %vm882, %v405, 0
        %v1034 = vsel %vm882, %v406, 0
        %v1037 = vsel %vm882, %v407, 0
        %v1040 = vsel %vm882, %v408, 0
        %v1043 = vsel %vm882, %v409, 0
        %v1046 = vsel %vm882, %v410, 0
        %v1049 = vsel %vm882, %v411, 0
        %v1052 = vsel %vm882, %v412, 0
        %v1055 = vsel %vm882, %v413, 0
        %v1058 = vsel %vm882, %v414, 0
        %v1061 = vsel %vm882, %v415, 0
        %v1064 = vsel %vm882, %v416, 0
        %v1067 = vsel %vm882, %v417, 0
        %v1070 = vsel %vm882, %v418, 0
        %v1073 = vsel %vm882, %v419, 0
        %1075 = vmatprep.subr.mxu0 0.0
        %1076 = vmatpush1.msra.mxu0 0.0
        %1077 = vmatprep.subr.mxu0 0.0
        %1078 = vmatpush1.msra.mxu0 0.0
        %1079 = vmatprep.subr.mxu0 0.0
        %1080 = vmatpush1.msra.mxu0 0.0
        %1081 = vmatprep.subr.mxu0 0.0
        %1082 = vmatpush1.msra.mxu0 0.0
        %1083 = vmatprep.subr.mxu0 0.0
        %1084 = vmatpush1.msra.mxu0 0.0
        %1085 = vmatprep.subr.mxu0 0.0
        %1086 = vmatpush1.msra.mxu0 0.0
        %1087 = vmatprep.subr.mxu0 0.0
        %1088 = vmatpush1.msra.mxu0 0.0
        %1089 = vmatprep.subr.mxu0 0.0
        %1090 = vmatpush1.msra.mxu0 0.0
        %1091 = vmatprep.subr.mxu0 0.0
        %1092 = vmatpush1.msra.mxu0 0.0
        %1093 = vmatprep.subr.mxu0 0.0
        %1094 = vmatpush1.msra.mxu0 0.0
        %1095 = vmatprep.subr.mxu0 0.0
        %1096 = vmatpush1.msra.mxu0 0.0
        %1097 = vmatprep.subr.mxu0 0.0
        %1098 = vmatpush1.msra.mxu0 0.0
        %1099 = vmatprep.subr.mxu0 0.0
        %1100 = vmatpush1.msra.mxu0 %v491
        %1101 = vmatprep.subr.mxu0 0.0
        %1102 = vmatpush1.msra.mxu0 %v490
        %1103 = vmatprep.subr.mxu0 0.0
        %1104 = vmatpush1.msra.mxu0 %v489
        %1105 = vmatprep.subr.mxu0 0.0
        %1106 = vmatpush1.msra.mxu0 %v488
        %1107 = vmatprep.subr.mxu0 0.0
        %1108 = vmatpush2.msra.mxu0 0.0
        %1109 = vmatprep.subr.mxu0 0.0
        %1110 = vmatpush2.msra.mxu0 0.0
        %1111 = vmatprep.subr.mxu0 0.0
        %1112 = vmatpush2.msra.mxu0 0.0
        %1113 = vmatprep.subr.mxu0 0.0
        %1114 = vmatpush2.msra.mxu0 0.0
        %1115 = vmatprep.subr.mxu0 0.0
        %1116 = vmatpush2.msra.mxu0 0.0
        %1117 = vmatprep.subr.mxu0 0.0
        %1118 = vmatpush2.msra.mxu0 0.0
        %1119 = vmatprep.subr.mxu0 0.0
        %1120 = vmatpush2.msra.mxu0 0.0
        %1121 = vmatprep.subr.mxu0 0.0
        %1122 = vmatpush2.msra.mxu0 0.0
        %1123 = vmatprep.subr.mxu0 0.0
        %1124 = vmatpush2.msra.mxu0 0.0
        %1125 = vmatprep.subr.mxu0 0.0
        %1126 = vmatpush2.msra.mxu0 0.0
        %1127 = vmatprep.subr.mxu0 0.0
        %1128 = vmatpush2.msra.mxu0 0.0
        %1129 = vmatprep.subr.mxu0 0.0
        %1130 = vmatpush2.msra.mxu0 0.0
        %1131 = vmatprep.subr.mxu0 0.0
        %1132 = vmatpush2.msra.mxu0 0.0
        %1133 = vmatprep.subr.mxu0 0.0
        %1134 = vmatpush2.msra.mxu0 0.0
        %1135 = vmatprep.subr.mxu0 0.0
        %1136 = vmatpush2.msra.mxu0 0.0
        %1137 = vmatprep.subr.mxu0 0.0
        %1138 = vmatpush2.msra.mxu0 0.0
        %1139 = vmatprep.mubr.f32.mxu0 0.0
        %1140 = vmatmul.mubr.f32.gmra.mxu0 %v884
        %v1141 = vpop.f32.mrf.mxu0
        %v1142 = vadd.f32 %v818, %v1141
        %v1143 = vpop.f32.mrf.mxu0
        %1144 = vmatprep.mubr.f32.mxu0 0.0
        %1145 = vmatmul.mubr.f32.gmra.mxu0 %v887
        %v1146 = vpop.f32.mrf.mxu0
        %v1147 = vadd.f32 %v819, %v1146
        %v1148 = vpop.f32.mrf.mxu0
        %1149 = vmatprep.mubr.f32.mxu0 0.0
        %1150 = vmatmul.mubr.f32.gmra.mxu0 %v890
        %v1151 = vpop.f32.mrf.mxu0
        %v1152 = vadd.f32 %v820, %v1151
        %v1153 = vpop.f32.mrf.mxu0
        %1154 = vmatprep.mubr.f32.mxu0 0.0
        %1155 = vmatmul.mubr.f32.gmra.mxu0 %v893
        %v1156 = vpop.f32.mrf.mxu0
        %v1157 = vadd.f32 %v821, %v1156
        %v1158 = vpop.f32.mrf.mxu0
        %1159 = vmatprep.mubr.f32.mxu0 0.0
        %1160 = vmatmul.mubr.f32.gmra.mxu0 %v896
        %v1161 = vpop.f32.mrf.mxu0
        %v1162 = vadd.f32 %v822, %v1161
        %v1163 = vpop.f32.mrf.mxu0
        %1164 = vmatprep.mubr.f32.mxu0 0.0
        %1165 = vmatmul.mubr.f32.gmra.mxu0 %v899
        %v1166 = vpop.f32.mrf.mxu0
        %v1167 = vadd.f32 %v823, %v1166
        %v1168 = vpop.f32.mrf.mxu0
        %1169 = vmatprep.mubr.f32.mxu0 0.0
        %1170 = vmatmul.mubr.f32.gmra.mxu0 %v902
        %v1171 = vpop.f32.mrf.mxu0
        %v1172 = vadd.f32 %v824, %v1171
        %v1173 = vpop.f32.mrf.mxu0
        %1174 = vmatprep.mubr.f32.mxu0 0.0
        %1175 = vmatmul.mubr.f32.gmra.mxu0 %v905
        %v1176 = vpop.f32.mrf.mxu0
        %v1177 = vadd.f32 %v825, %v1176
        %v1178 = vpop.f32.mrf.mxu0
        %1179 = vmatprep.mubr.f32.mxu0 0.0
        %1180 = vmatmul.mubr.f32.gmra.mxu0 %v908
        %v1181 = vpop.f32.mrf.mxu0
        %v1182 = vadd.f32 %v826, %v1181
        %v1183 = vpop.f32.mrf.mxu0
        %1184 = vmatprep.mubr.f32.mxu0 0.0
        %1185 = vmatmul.mubr.f32.gmra.mxu0 %v911
        %v1186 = vpop.f32.mrf.mxu0
        %v1187 = vadd.f32 %v827, %v1186
        %v1188 = vpop.f32.mrf.mxu0
        %1189 = vmatprep.mubr.f32.mxu0 0.0
        %1190 = vmatmul.mubr.f32.gmra.mxu0 %v914
        %v1191 = vpop.f32.mrf.mxu0
        %v1192 = vadd.f32 %v828, %v1191
        %v1193 = vpop.f32.mrf.mxu0
        %1194 = vmatprep.mubr.f32.mxu0 0.0
        %1195 = vmatmul.mubr.f32.gmra.mxu0 %v917
        %v1196 = vpop.f32.mrf.mxu0
        %v1197 = vadd.f32 %v829, %v1196
        %v1198 = vpop.f32.mrf.mxu0
        %1199 = vmatprep.mubr.f32.mxu0 0.0
        %1200 = vmatmul.mubr.f32.gmra.mxu0 %v920
        %v1201 = vpop.f32.mrf.mxu0
        %v1202 = vadd.f32 %v830, %v1201
        %v1203 = vpop.f32.mrf.mxu0
        %1204 = vmatprep.mubr.f32.mxu0 0.0
        %1205 = vmatmul.mubr.f32.gmra.mxu0 %v923
        %v1206 = vpop.f32.mrf.mxu0
        %v1207 = vadd.f32 %v831, %v1206
        %v1208 = vpop.f32.mrf.mxu0
        %1209 = vmatprep.mubr.f32.mxu0 0.0
        %1210 = vmatmul.mubr.f32.gmra.mxu0 %v926
        %v1211 = vpop.f32.mrf.mxu0
        %v1212 = vadd.f32 %v832, %v1211
        %v1213 = vpop.f32.mrf.mxu0
        %1214 = vmatprep.mubr.f32.mxu0 0.0
        %1215 = vmatmul.mubr.f32.gmra.mxu0 %v929
        %v1216 = vpop.f32.mrf.mxu0
        %v1217 = vadd.f32 %v833, %v1216
        %v1218 = vpop.f32.mrf.mxu0
        %1219 = vmatprep.mubr.f32.mxu0 0.0
        %1220 = vmatmul.mubr.f32.gmra.mxu0 %v932
        %v1221 = vpop.f32.mrf.mxu0
        %v1222 = vadd.f32 %v834, %v1221
        %v1223 = vpop.f32.mrf.mxu0
        %1224 = vmatprep.mubr.f32.mxu0 0.0
        %1225 = vmatmul.mubr.f32.gmra.mxu0 %v935
        %v1226 = vpop.f32.mrf.mxu0
        %v1227 = vadd.f32 %v835, %v1226
        %v1228 = vpop.f32.mrf.mxu0
        %1229 = vmatprep.mubr.f32.mxu0 0.0
        %1230 = vmatmul.mubr.f32.gmra.mxu0 %v938
        %v1231 = vpop.f32.mrf.mxu0
        %v1232 = vadd.f32 %v836, %v1231
        %v1233 = vpop.f32.mrf.mxu0
        %1234 = vmatprep.mubr.f32.mxu0 0.0
        %1235 = vmatmul.mubr.f32.gmra.mxu0 %v941
        %v1236 = vpop.f32.mrf.mxu0
        %v1237 = vadd.f32 %v837, %v1236
        %v1238 = vpop.f32.mrf.mxu0
        %1239 = vmatprep.mubr.f32.mxu0 0.0
        %1240 = vmatmul.mubr.f32.gmra.mxu0 %v944
        %v1241 = vpop.f32.mrf.mxu0
        %v1242 = vadd.f32 %v838, %v1241
        %v1243 = vpop.f32.mrf.mxu0
        %1244 = vmatprep.mubr.f32.mxu0 0.0
        %1245 = vmatmul.mubr.f32.gmra.mxu0 %v947
        %v1246 = vpop.f32.mrf.mxu0
        %v1247 = vadd.f32 %v839, %v1246
        %v1248 = vpop.f32.mrf.mxu0
        %1249 = vmatprep.mubr.f32.mxu0 0.0
        %1250 = vmatmul.mubr.f32.gmra.mxu0 %v950
        %v1251 = vpop.f32.mrf.mxu0
        %v1252 = vadd.f32 %v840, %v1251
        %v1253 = vpop.f32.mrf.mxu0
        %1254 = vmatprep.mubr.f32.mxu0 0.0
        %1255 = vmatmul.mubr.f32.gmra.mxu0 %v953
        %v1256 = vpop.f32.mrf.mxu0
        %v1257 = vadd.f32 %v841, %v1256
        %v1258 = vpop.f32.mrf.mxu0
        %1259 = vmatprep.mubr.f32.mxu0 0.0
        %1260 = vmatmul.mubr.f32.gmra.mxu0 %v956
        %v1261 = vpop.f32.mrf.mxu0
        %v1262 = vadd.f32 %v842, %v1261
        %v1263 = vpop.f32.mrf.mxu0
        %1264 = vmatprep.mubr.f32.mxu0 0.0
        %1265 = vmatmul.mubr.f32.gmra.mxu0 %v959
        %v1266 = vpop.f32.mrf.mxu0
        %v1267 = vadd.f32 %v843, %v1266
        %v1268 = vpop.f32.mrf.mxu0
        %1269 = vmatprep.mubr.f32.mxu0 0.0
        %1270 = vmatmul.mubr.f32.gmra.mxu0 %v962
        %v1271 = vpop.f32.mrf.mxu0
        %v1272 = vadd.f32 %v844, %v1271
        %v1273 = vpop.f32.mrf.mxu0
        %1274 = vmatprep.mubr.f32.mxu0 0.0
        %1275 = vmatmul.mubr.f32.gmra.mxu0 %v965
        %v1276 = vpop.f32.mrf.mxu0
        %v1277 = vadd.f32 %v845, %v1276
        %v1278 = vpop.f32.mrf.mxu0
        %1279 = vmatprep.mubr.f32.mxu0 0.0
        %1280 = vmatmul.mubr.f32.gmra.mxu0 %v968
        %v1281 = vpop.f32.mrf.mxu0
        %v1282 = vadd.f32 %v846, %v1281
        %v1283 = vpop.f32.mrf.mxu0
        %1284 = vmatprep.mubr.f32.mxu0 0.0
        %1285 = vmatmul.mubr.f32.gmra.mxu0 %v971
        %v1286 = vpop.f32.mrf.mxu0
        %v1287 = vadd.f32 %v847, %v1286
        %v1288 = vpop.f32.mrf.mxu0
        %1289 = vmatprep.mubr.f32.mxu0 0.0
        %1290 = vmatmul.mubr.f32.gmra.mxu0 %v974
        %v1291 = vpop.f32.mrf.mxu0
        %v1292 = vadd.f32 %v848, %v1291
        %v1293 = vpop.f32.mrf.mxu0
        %1294 = vmatprep.mubr.f32.mxu0 0.0
        %1295 = vmatmul.mubr.f32.gmra.mxu0 %v977
        %v1296 = vpop.f32.mrf.mxu0
        %v1297 = vadd.f32 %v849, %v1296
        %v1298 = vpop.f32.mrf.mxu0
        %1299 = vmatprep.mubr.f32.mxu0 0.0
        %1300 = vmatmul.mubr.f32.gmra.mxu0 %v980
        %v1301 = vpop.f32.mrf.mxu0
        %v1302 = vadd.f32 %v850, %v1301
        %v1303 = vpop.f32.mrf.mxu0
        %1304 = vmatprep.mubr.f32.mxu0 0.0
        %1305 = vmatmul.mubr.f32.gmra.mxu0 %v983
        %v1306 = vpop.f32.mrf.mxu0
        %v1307 = vadd.f32 %v851, %v1306
        %v1308 = vpop.f32.mrf.mxu0
        %1309 = vmatprep.mubr.f32.mxu0 0.0
        %1310 = vmatmul.mubr.f32.gmra.mxu0 %v986
        %v1311 = vpop.f32.mrf.mxu0
        %v1312 = vadd.f32 %v852, %v1311
        %v1313 = vpop.f32.mrf.mxu0
        %1314 = vmatprep.mubr.f32.mxu0 0.0
        %1315 = vmatmul.mubr.f32.gmra.mxu0 %v989
        %v1316 = vpop.f32.mrf.mxu0
        %v1317 = vadd.f32 %v853, %v1316
        %v1318 = vpop.f32.mrf.mxu0
        %1319 = vmatprep.mubr.f32.mxu0 0.0
        %1320 = vmatmul.mubr.f32.gmra.mxu0 %v992
        %v1321 = vpop.f32.mrf.mxu0
        %v1322 = vadd.f32 %v854, %v1321
        %v1323 = vpop.f32.mrf.mxu0
        %1324 = vmatprep.mubr.f32.mxu0 0.0
        %1325 = vmatmul.mubr.f32.gmra.mxu0 %v995
        %v1326 = vpop.f32.mrf.mxu0
        %v1327 = vadd.f32 %v855, %v1326
        %v1328 = vpop.f32.mrf.mxu0
        %1329 = vmatprep.mubr.f32.mxu0 0.0
        %1330 = vmatmul.mubr.f32.gmra.mxu0 %v998
        %v1331 = vpop.f32.mrf.mxu0
        %v1332 = vadd.f32 %v856, %v1331
        %v1333 = vpop.f32.mrf.mxu0
        %1334 = vmatprep.mubr.f32.mxu0 0.0
        %1335 = vmatmul.mubr.f32.gmra.mxu0 %v1001
        %v1336 = vpop.f32.mrf.mxu0
        %v1337 = vadd.f32 %v857, %v1336
        %v1338 = vpop.f32.mrf.mxu0
        %1339 = vmatprep.mubr.f32.mxu0 0.0
        %1340 = vmatmul.mubr.f32.gmra.mxu0 %v1004
        %v1341 = vpop.f32.mrf.mxu0
        %v1342 = vadd.f32 %v858, %v1341
        %v1343 = vpop.f32.mrf.mxu0
        %1344 = vmatprep.mubr.f32.mxu0 0.0
        %1345 = vmatmul.mubr.f32.gmra.mxu0 %v1007
        %v1346 = vpop.f32.mrf.mxu0
        %v1347 = vadd.f32 %v859, %v1346
        %v1348 = vpop.f32.mrf.mxu0
        %1349 = vmatprep.mubr.f32.mxu0 0.0
        %1350 = vmatmul.mubr.f32.gmra.mxu0 %v1010
        %v1351 = vpop.f32.mrf.mxu0
        %v1352 = vadd.f32 %v860, %v1351
        %v1353 = vpop.f32.mrf.mxu0
        %1354 = vmatprep.mubr.f32.mxu0 0.0
        %1355 = vmatmul.mubr.f32.gmra.mxu0 %v1013
        %v1356 = vpop.f32.mrf.mxu0
        %v1357 = vadd.f32 %v861, %v1356
        %v1358 = vpop.f32.mrf.mxu0
        %1359 = vmatprep.mubr.f32.mxu0 0.0
        %1360 = vmatmul.mubr.f32.gmra.mxu0 %v1016
        %v1361 = vpop.f32.mrf.mxu0
        %v1362 = vadd.f32 %v862, %v1361
        %v1363 = vpop.f32.mrf.mxu0
        %1364 = vmatprep.mubr.f32.mxu0 0.0
        %1365 = vmatmul.mubr.f32.gmra.mxu0 %v1019
        %v1366 = vpop.f32.mrf.mxu0
        %v1367 = vadd.f32 %v863, %v1366
        %v1368 = vpop.f32.mrf.mxu0
        %1369 = vmatprep.mubr.f32.mxu0 0.0
        %1370 = vmatmul.mubr.f32.gmra.mxu0 %v1022
        %v1371 = vpop.f32.mrf.mxu0
        %v1372 = vadd.f32 %v864, %v1371
        %v1373 = vpop.f32.mrf.mxu0
        %1374 = vmatprep.mubr.f32.mxu0 0.0
        %1375 = vmatmul.mubr.f32.gmra.mxu0 %v1025
        %v1376 = vpop.f32.mrf.mxu0
        %v1377 = vadd.f32 %v865, %v1376
        %v1378 = vpop.f32.mrf.mxu0
        %1379 = vmatprep.mubr.f32.mxu0 0.0
        %1380 = vmatmul.mubr.f32.gmra.mxu0 %v1028
        %v1381 = vpop.f32.mrf.mxu0
        %v1382 = vadd.f32 %v866, %v1381
        %v1383 = vpop.f32.mrf.mxu0
        %1384 = vmatprep.mubr.f32.mxu0 0.0
        %1385 = vmatmul.mubr.f32.gmra.mxu0 %v1031
        %v1386 = vpop.f32.mrf.mxu0
        %v1387 = vadd.f32 %v867, %v1386
        %v1388 = vpop.f32.mrf.mxu0
        %1389 = vmatprep.mubr.f32.mxu0 0.0
        %1390 = vmatmul.mubr.f32.gmra.mxu0 %v1034
        %v1391 = vpop.f32.mrf.mxu0
        %v1392 = vadd.f32 %v868, %v1391
        %v1393 = vpop.f32.mrf.mxu0
        %1394 = vmatprep.mubr.f32.mxu0 0.0
        %1395 = vmatmul.mubr.f32.gmra.mxu0 %v1037
        %v1396 = vpop.f32.mrf.mxu0
        %v1397 = vadd.f32 %v869, %v1396
        %v1398 = vpop.f32.mrf.mxu0
        %1399 = vmatprep.mubr.f32.mxu0 0.0
        %1400 = vmatmul.mubr.f32.gmra.mxu0 %v1040
        %v1401 = vpop.f32.mrf.mxu0
        %v1402 = vadd.f32 %v870, %v1401
        %v1403 = vpop.f32.mrf.mxu0
        %1404 = vmatprep.mubr.f32.mxu0 0.0
        %1405 = vmatmul.mubr.f32.gmra.mxu0 %v1043
        %v1406 = vpop.f32.mrf.mxu0
        %v1407 = vadd.f32 %v871, %v1406
        %v1408 = vpop.f32.mrf.mxu0
        %1409 = vmatprep.mubr.f32.mxu0 0.0
        %1410 = vmatmul.mubr.f32.gmra.mxu0 %v1046
        %v1411 = vpop.f32.mrf.mxu0
        %v1412 = vadd.f32 %v872, %v1411
        %v1413 = vpop.f32.mrf.mxu0
        %1414 = vmatprep.mubr.f32.mxu0 0.0
        %1415 = vmatmul.mubr.f32.gmra.mxu0 %v1049
        %v1416 = vpop.f32.mrf.mxu0
        %v1417 = vadd.f32 %v873, %v1416
        %v1418 = vpop.f32.mrf.mxu0
        %1419 = vmatprep.mubr.f32.mxu0 0.0
        %1420 = vmatmul.mubr.f32.gmra.mxu0 %v1052
        %v1421 = vpop.f32.mrf.mxu0
        %v1422 = vadd.f32 %v874, %v1421
        %v1423 = vpop.f32.mrf.mxu0
        %1424 = vmatprep.mubr.f32.mxu0 0.0
        %1425 = vmatmul.mubr.f32.gmra.mxu0 %v1055
        %v1426 = vpop.f32.mrf.mxu0
        %v1427 = vadd.f32 %v875, %v1426
        %v1428 = vpop.f32.mrf.mxu0
        %1429 = vmatprep.mubr.f32.mxu0 0.0
        %1430 = vmatmul.mubr.f32.gmra.mxu0 %v1058
        %v1431 = vpop.f32.mrf.mxu0
        %v1432 = vadd.f32 %v876, %v1431
        %v1433 = vpop.f32.mrf.mxu0
        %1434 = vmatprep.mubr.f32.mxu0 0.0
        %1435 = vmatmul.mubr.f32.gmra.mxu0 %v1061
        %v1436 = vpop.f32.mrf.mxu0
        %v1437 = vadd.f32 %v877, %v1436
        %v1438 = vpop.f32.mrf.mxu0
        %1439 = vmatprep.mubr.f32.mxu0 0.0
        %1440 = vmatmul.mubr.f32.gmra.mxu0 %v1064
        %v1441 = vpop.f32.mrf.mxu0
        %v1442 = vadd.f32 %v878, %v1441
        %v1443 = vpop.f32.mrf.mxu0
        %1444 = vmatprep.mubr.f32.mxu0 0.0
        %1445 = vmatmul.mubr.f32.gmra.mxu0 %v1067
        %v1446 = vpop.f32.mrf.mxu0
        %v1447 = vadd.f32 %v879, %v1446
        %v1448 = vpop.f32.mrf.mxu0
        %1449 = vmatprep.mubr.f32.mxu0 0.0
        %1450 = vmatmul.mubr.f32.gmra.mxu0 %v1070
        %v1451 = vpop.f32.mrf.mxu0
        %v1452 = vadd.f32 %v880, %v1451
        %v1453 = vpop.f32.mrf.mxu0
        %1454 = vmatprep.mubr.f32.mxu0 0.0
        %1455 = vmatmul.mubr.f32.gmra.mxu0 %v1073
        %v1456 = vpop.f32.mrf.mxu0
        %v1457 = vadd.f32 %v881, %v1456
        %v1458 = vpop.f32.mrf.mxu0
        %1459 = vdwg.mxu0
        %v1460 = vld [vmem:[%s4] sm:$0x1]
        %v1462 = vlaneseq
        %v1463 = vshrl.u32 %v1462, 7
        %v1464 = vsub.s32 0, %v1463
        %v1465 = vrot.slane %v1460, %v1464
        %v1467 = vadd.f32 %v1142, %v1465
        %v1468 = vadd.f32 %v1147, %v1465
        %v1469 = vadd.f32 %v1152, %v1465
        %v1470 = vadd.f32 %v1157, %v1465
        %v1471 = vadd.f32 %v1162, %v1465
        %v1472 = vadd.f32 %v1167, %v1465
        %v1473 = vadd.f32 %v1172, %v1465
        %v1474 = vadd.f32 %v1177, %v1465
        %v1475 = vadd.f32 %v1182, %v1465
        %v1476 = vadd.f32 %v1187, %v1465
        %v1477 = vadd.f32 %v1192, %v1465
        %v1478 = vadd.f32 %v1197, %v1465
        %v1479 = vadd.f32 %v1202, %v1465
        %v1480 = vadd.f32 %v1207, %v1465
        %v1481 = vadd.f32 %v1212, %v1465
        %v1482 = vadd.f32 %v1217, %v1465
        %v1483 = vadd.f32 %v1222, %v1465
        %v1484 = vadd.f32 %v1227, %v1465
        %v1485 = vadd.f32 %v1232, %v1465
        %v1486 = vadd.f32 %v1237, %v1465
        %v1487 = vadd.f32 %v1242, %v1465
        %v1488 = vadd.f32 %v1247, %v1465
        %v1489 = vadd.f32 %v1252, %v1465
        %v1490 = vadd.f32 %v1257, %v1465
        %v1491 = vadd.f32 %v1262, %v1465
        %v1492 = vadd.f32 %v1267, %v1465
        %v1493 = vadd.f32 %v1272, %v1465
        %v1494 = vadd.f32 %v1277, %v1465
        %v1495 = vadd.f32 %v1282, %v1465
        %v1496 = vadd.f32 %v1287, %v1465
        %v1497 = vadd.f32 %v1292, %v1465
        %v1498 = vadd.f32 %v1297, %v1465
        %v1499 = vadd.f32 %v1302, %v1465
        %v1500 = vadd.f32 %v1307, %v1465
        %v1501 = vadd.f32 %v1312, %v1465
        %v1502 = vadd.f32 %v1317, %v1465
        %v1503 = vadd.f32 %v1322, %v1465
        %v1504 = vadd.f32 %v1327, %v1465
        %v1505 = vadd.f32 %v1332, %v1465
        %v1506 = vadd.f32 %v1337, %v1465
        %v1507 = vadd.f32 %v1342, %v1465
        %v1508 = vadd.f32 %v1347, %v1465
        %v1509 = vadd.f32 %v1352, %v1465
        %v1510 = vadd.f32 %v1357, %v1465
        %v1511 = vadd.f32 %v1362, %v1465
        %v1512 = vadd.f32 %v1367, %v1465
        %v1513 = vadd.f32 %v1372, %v1465
        %v1514 = vadd.f32 %v1377, %v1465
        %v1515 = vadd.f32 %v1382, %v1465
        %v1516 = vadd.f32 %v1387, %v1465
        %v1517 = vadd.f32 %v1392, %v1465
        %v1518 = vadd.f32 %v1397, %v1465
        %v1519 = vadd.f32 %v1402, %v1465
        %v1520 = vadd.f32 %v1407, %v1465
        %v1521 = vadd.f32 %v1412, %v1465
        %v1522 = vadd.f32 %v1417, %v1465
        %v1523 = vadd.f32 %v1422, %v1465
        %v1524 = vadd.f32 %v1427, %v1465
        %v1525 = vadd.f32 %v1432, %v1465
        %v1526 = vadd.f32 %v1437, %v1465
        %v1527 = vadd.f32 %v1442, %v1465
        %v1528 = vadd.f32 %v1447, %v1465
        %v1529 = vadd.f32 %v1452, %v1465
        %v1530 = vadd.f32 %v1457, %v1465
        %v1531 = vmax.f32 %v1467, 0.0
        %v1532 = vmax.f32 %v1468, 0.0
        %v1533 = vmax.f32 %v1469, 0.0
        %v1534 = vmax.f32 %v1470, 0.0
        %v1535 = vmax.f32 %v1471, 0.0
        %v1536 = vmax.f32 %v1472, 0.0
        %v1537 = vmax.f32 %v1473, 0.0
        %v1538 = vmax.f32 %v1474, 0.0
        %v1539 = vmax.f32 %v1475, 0.0
        %v1540 = vmax.f32 %v1476, 0.0
        %v1541 = vmax.f32 %v1477, 0.0
        %v1542 = vmax.f32 %v1478, 0.0
        %v1543 = vmax.f32 %v1479, 0.0
        %v1544 = vmax.f32 %v1480, 0.0
        %v1545 = vmax.f32 %v1481, 0.0
        %v1546 = vmax.f32 %v1482, 0.0
        %v1547 = vmax.f32 %v1483, 0.0
        %v1548 = vmax.f32 %v1484, 0.0
        %v1549 = vmax.f32 %v1485, 0.0
        %v1550 = vmax.f32 %v1486, 0.0
        %v1551 = vmax.f32 %v1487, 0.0
        %v1552 = vmax.f32 %v1488, 0.0
        %v1553 = vmax.f32 %v1489, 0.0
        %v1554 = vmax.f32 %v1490, 0.0
        %v1555 = vmax.f32 %v1491, 0.0
        %v1556 = vmax.f32 %v1492, 0.0
        %v1557 = vmax.f32 %v1493, 0.0
        %v1558 = vmax.f32 %v1494, 0.0
        %v1559 = vmax.f32 %v1495, 0.0
        %v1560 = vmax.f32 %v1496, 0.0
        %v1561 = vmax.f32 %v1497, 0.0
        %v1562 = vmax.f32 %v1498, 0.0
        %v1563 = vmax.f32 %v1499, 0.0
        %v1564 = vmax.f32 %v1500, 0.0
        %v1565 = vmax.f32 %v1501, 0.0
        %v1566 = vmax.f32 %v1502, 0.0
        %v1567 = vmax.f32 %v1503, 0.0
        %v1568 = vmax.f32 %v1504, 0.0
        %v1569 = vmax.f32 %v1505, 0.0
        %v1570 = vmax.f32 %v1506, 0.0
        %v1571 = vmax.f32 %v1507, 0.0
        %v1572 = vmax.f32 %v1508, 0.0
        %v1573 = vmax.f32 %v1509, 0.0
        %v1574 = vmax.f32 %v1510, 0.0
        %v1575 = vmax.f32 %v1511, 0.0
        %v1576 = vmax.f32 %v1512, 0.0
        %v1577 = vmax.f32 %v1513, 0.0
        %v1578 = vmax.f32 %v1514, 0.0
        %v1579 = vmax.f32 %v1515, 0.0
        %v1580 = vmax.f32 %v1516, 0.0
        %v1581 = vmax.f32 %v1517, 0.0
        %v1582 = vmax.f32 %v1518, 0.0
        %v1583 = vmax.f32 %v1519, 0.0
        %v1584 = vmax.f32 %v1520, 0.0
        %v1585 = vmax.f32 %v1521, 0.0
        %v1586 = vmax.f32 %v1522, 0.0
        %v1587 = vmax.f32 %v1523, 0.0
        %v1588 = vmax.f32 %v1524, 0.0
        %v1589 = vmax.f32 %v1525, 0.0
        %v1590 = vmax.f32 %v1526, 0.0
        %v1591 = vmax.f32 %v1527, 0.0
        %v1592 = vmax.f32 %v1528, 0.0
        %v1593 = vmax.f32 %v1529, 0.0
        %v1594 = vmax.f32 %v1530, 0.0
        %v1595 = vld [vmem:[%s5] sm:$0xf]
        %v1596 = vld [vmem:[%s5 + $0x4] sm:$0xf]
        %v1597 = vld [vmem:[%s5 + $0x8] sm:$0xf]
        %v1598 = vld [vmem:[%s5 + $0xc] sm:$0xf]
        %v1599 = vld [vmem:[%s5 + $0x10] sm:$0xf]
        %v1600 = vld [vmem:[%s5 + $0x14] sm:$0xf]
        %v1601 = vld [vmem:[%s5 + $0x18] sm:$0xf]
        %v1602 = vld [vmem:[%s5 + $0x1c] sm:$0xf]
        %v1603 = vld [vmem:[%s5 + $0x20] sm:$0xf]
        %v1604 = vld [vmem:[%s5 + $0x24] sm:$0xf]
        %v1605 = vld [vmem:[%s5 + $0x28] sm:$0xf]
        %v1606 = vld [vmem:[%s5 + $0x2c] sm:$0xf]
        %v1607 = vld [vmem:[%s5 + $0x30] sm:$0xf]
        %v1608 = vld [vmem:[%s5 + $0x34] sm:$0xf]
        %v1609 = vld [vmem:[%s5 + $0x38] sm:$0xf]
        %v1610 = vld [vmem:[%s5 + $0x3c] sm:$0xf]
        %v1611 = vunpack.c.l.bf16 %v1595
        %v1612 = vunpack.c.l.bf16 %v1596
        %v1613 = vunpack.c.l.bf16 %v1597
        %v1614 = vunpack.c.l.bf16 %v1598
        %v1615 = vunpack.c.l.bf16 %v1599
        %v1616 = vunpack.c.l.bf16 %v1600
        %v1617 = vunpack.c.l.bf16 %v1601
        %v1618 = vunpack.c.l.bf16 %v1602
        %v1619 = vunpack.c.l.bf16 %v1603
        %v1620 = vunpack.c.l.bf16 %v1604
        %v1621 = vunpack.c.l.bf16 %v1605
        %v1622 = vunpack.c.l.bf16 %v1606
        %v1623 = vunpack.c.l.bf16 %v1607
        %v1624 = vunpack.c.l.bf16 %v1608
        %v1625 = vunpack.c.l.bf16 %v1609
        %v1626 = vunpack.c.l.bf16 %v1610
        %v1627 = vld [vmem:[%s6] sm:$0x1]
        %v1629 = vlaneseq
        %v1630 = vshrl.u32 %v1629, 7
        %v1631 = vsub.s32 0, %v1630
        %v1632 = vrot.slane %v1627, %v1631
        %1634 = vmatprep.subr.mxu0 0.0
        %1635 = vmatpush1.msra.mxu0 %v1626
        %1636 = vmatprep.subr.mxu0 0.0
        %1637 = vmatpush1.msra.mxu0 %v1625
        %1638 = vmatprep.subr.mxu0 0.0
        %1639 = vmatpush1.msra.mxu0 %v1624
        %1640 = vmatprep.subr.mxu0 0.0
        %1641 = vmatpush1.msra.mxu0 %v1623
        %1642 = vmatprep.subr.mxu0 0.0
        %1643 = vmatpush1.msra.mxu0 %v1622
        %1644 = vmatprep.subr.mxu0 0.0
        %1645 = vmatpush1.msra.mxu0 %v1621
        %1646 = vmatprep.subr.mxu0 0.0
        %1647 = vmatpush1.msra.mxu0 %v1620
        %1648 = vmatprep.subr.mxu0 0.0
        %1649 = vmatpush1.msra.mxu0 %v1619
        %1650 = vmatprep.subr.mxu0 0.0
        %1651 = vmatpush1.msra.mxu0 %v1618
        %1652 = vmatprep.subr.mxu0 0.0
        %1653 = vmatpush1.msra.mxu0 %v1617
        %1654 = vmatprep.subr.mxu0 0.0
        %1655 = vmatpush1.msra.mxu0 %v1616
        %1656 = vmatprep.subr.mxu0 0.0
        %1657 = vmatpush1.msra.mxu0 %v1615
        %1658 = vmatprep.subr.mxu0 0.0
        %1659 = vmatpush1.msra.mxu0 %v1614
        %1660 = vmatprep.subr.mxu0 0.0
        %1661 = vmatpush1.msra.mxu0 %v1613
        %1662 = vmatprep.subr.mxu0 0.0
        %1663 = vmatpush1.msra.mxu0 %v1612
        %1664 = vmatprep.subr.mxu0 0.0
        %1665 = vmatpush1.msra.mxu0 %v1611
        %1666 = vmatprep.subr.mxu0 0.0
        %1667 = vmatpush2.msra.mxu0 0.0
        %1668 = vmatprep.subr.mxu0 0.0
        %1669 = vmatpush2.msra.mxu0 0.0
        %1670 = vmatprep.subr.mxu0 0.0
        %1671 = vmatpush2.msra.mxu0 0.0
        %1672 = vmatprep.subr.mxu0 0.0
        %1673 = vmatpush2.msra.mxu0 0.0
        %1674 = vmatprep.subr.mxu0 0.0
        %1675 = vmatpush2.msra.mxu0 0.0
        %1676 = vmatprep.subr.mxu0 0.0
        %1677 = vmatpush2.msra.mxu0 0.0
        %1678 = vmatprep.subr.mxu0 0.0
        %1679 = vmatpush2.msra.mxu0 0.0
        %1680 = vmatprep.subr.mxu0 0.0
        %1681 = vmatpush2.msra.mxu0 0.0
        %1682 = vmatprep.subr.mxu0 0.0
        %1683 = vmatpush2.msra.mxu0 0.0
        %1684 = vmatprep.subr.mxu0 0.0
        %1685 = vmatpush2.msra.mxu0 0.0
        %1686 = vmatprep.subr.mxu0 0.0
        %1687 = vmatpush2.msra.mxu0 0.0
        %1688 = vmatprep.subr.mxu0 0.0
        %1689 = vmatpush2.msra.mxu0 0.0
        %1690 = vmatprep.subr.mxu0 0.0
        %1691 = vmatpush2.msra.mxu0 0.0
        %1692 = vmatprep.subr.mxu0 0.0
        %1693 = vmatpush2.msra.mxu0 0.0
        %1694 = vmatprep.subr.mxu0 0.0
        %1695 = vmatpush2.msra.mxu0 0.0
        %1696 = vmatprep.subr.mxu0 0.0
        %1697 = vmatpush2.msra.mxu0 0.0
        %1698 = vmatprep.mubr.f32.mxu0 0.0
        %1699 = vmatmul.mubr.f32.gmra.mxu0 %v1531
        %v1700 = vpop.f32.mrf.mxu0
        %v1701 = vadd.f32 %v1632, %v1700
        %v1702 = vpop.f32.mrf.mxu0
        %1703 = vmatprep.mubr.f32.mxu0 0.0
        %1704 = vmatmul.mubr.f32.gmra.mxu0 %v1532
        %v1705 = vpop.f32.mrf.mxu0
        %v1706 = vadd.f32 %v1632, %v1705
        %v1707 = vpop.f32.mrf.mxu0
        %1708 = vmatprep.mubr.f32.mxu0 0.0
        %1709 = vmatmul.mubr.f32.gmra.mxu0 %v1533
        %v1710 = vpop.f32.mrf.mxu0
        %v1711 = vadd.f32 %v1632, %v1710
        %v1712 = vpop.f32.mrf.mxu0
        %1713 = vmatprep.mubr.f32.mxu0 0.0
        %1714 = vmatmul.mubr.f32.gmra.mxu0 %v1534
        %v1715 = vpop.f32.mrf.mxu0
        %v1716 = vadd.f32 %v1632, %v1715
        %v1717 = vpop.f32.mrf.mxu0
        %1718 = vmatprep.mubr.f32.mxu0 0.0
        %1719 = vmatmul.mubr.f32.gmra.mxu0 %v1535
        %v1720 = vpop.f32.mrf.mxu0
        %v1721 = vadd.f32 %v1632, %v1720
        %v1722 = vpop.f32.mrf.mxu0
        %1723 = vmatprep.mubr.f32.mxu0 0.0
        %1724 = vmatmul.mubr.f32.gmra.mxu0 %v1536
        %v1725 = vpop.f32.mrf.mxu0
        %v1726 = vadd.f32 %v1632, %v1725
        %v1727 = vpop.f32.mrf.mxu0
        %1728 = vmatprep.mubr.f32.mxu0 0.0
        %1729 = vmatmul.mubr.f32.gmra.mxu0 %v1537
        %v1730 = vpop.f32.mrf.mxu0
        %v1731 = vadd.f32 %v1632, %v1730
        %v1732 = vpop.f32.mrf.mxu0
        %1733 = vmatprep.mubr.f32.mxu0 0.0
        %1734 = vmatmul.mubr.f32.gmra.mxu0 %v1538
        %v1735 = vpop.f32.mrf.mxu0
        %v1736 = vadd.f32 %v1632, %v1735
        %v1737 = vpop.f32.mrf.mxu0
        %1738 = vmatprep.mubr.f32.mxu0 0.0
        %1739 = vmatmul.mubr.f32.gmra.mxu0 %v1539
        %v1740 = vpop.f32.mrf.mxu0
        %v1741 = vadd.f32 %v1632, %v1740
        %v1742 = vpop.f32.mrf.mxu0
        %1743 = vmatprep.mubr.f32.mxu0 0.0
        %1744 = vmatmul.mubr.f32.gmra.mxu0 %v1540
        %v1745 = vpop.f32.mrf.mxu0
        %v1746 = vadd.f32 %v1632, %v1745
        %v1747 = vpop.f32.mrf.mxu0
        %1748 = vmatprep.mubr.f32.mxu0 0.0
        %1749 = vmatmul.mubr.f32.gmra.mxu0 %v1541
        %v1750 = vpop.f32.mrf.mxu0
        %v1751 = vadd.f32 %v1632, %v1750
        %v1752 = vpop.f32.mrf.mxu0
        %1753 = vmatprep.mubr.f32.mxu0 0.0
        %1754 = vmatmul.mubr.f32.gmra.mxu0 %v1542
        %v1755 = vpop.f32.mrf.mxu0
        %v1756 = vadd.f32 %v1632, %v1755
        %v1757 = vpop.f32.mrf.mxu0
        %1758 = vmatprep.mubr.f32.mxu0 0.0
        %1759 = vmatmul.mubr.f32.gmra.mxu0 %v1543
        %v1760 = vpop.f32.mrf.mxu0
        %v1761 = vadd.f32 %v1632, %v1760
        %v1762 = vpop.f32.mrf.mxu0
        %1763 = vmatprep.mubr.f32.mxu0 0.0
        %1764 = vmatmul.mubr.f32.gmra.mxu0 %v1544
        %v1765 = vpop.f32.mrf.mxu0
        %v1766 = vadd.f32 %v1632, %v1765
        %v1767 = vpop.f32.mrf.mxu0
        %1768 = vmatprep.mubr.f32.mxu0 0.0
        %1769 = vmatmul.mubr.f32.gmra.mxu0 %v1545
        %v1770 = vpop.f32.mrf.mxu0
        %v1771 = vadd.f32 %v1632, %v1770
        %v1772 = vpop.f32.mrf.mxu0
        %1773 = vmatprep.mubr.f32.mxu0 0.0
        %1774 = vmatmul.mubr.f32.gmra.mxu0 %v1546
        %v1775 = vpop.f32.mrf.mxu0
        %v1776 = vadd.f32 %v1632, %v1775
        %v1777 = vpop.f32.mrf.mxu0
        %1778 = vmatprep.mubr.f32.mxu0 0.0
        %1779 = vmatmul.mubr.f32.gmra.mxu0 %v1547
        %v1780 = vpop.f32.mrf.mxu0
        %v1781 = vadd.f32 %v1632, %v1780
        %v1782 = vpop.f32.mrf.mxu0
        %1783 = vmatprep.mubr.f32.mxu0 0.0
        %1784 = vmatmul.mubr.f32.gmra.mxu0 %v1548
        %v1785 = vpop.f32.mrf.mxu0
        %v1786 = vadd.f32 %v1632, %v1785
        %v1787 = vpop.f32.mrf.mxu0
        %1788 = vmatprep.mubr.f32.mxu0 0.0
        %1789 = vmatmul.mubr.f32.gmra.mxu0 %v1549
        %v1790 = vpop.f32.mrf.mxu0
        %v1791 = vadd.f32 %v1632, %v1790
        %v1792 = vpop.f32.mrf.mxu0
        %1793 = vmatprep.mubr.f32.mxu0 0.0
        %1794 = vmatmul.mubr.f32.gmra.mxu0 %v1550
        %v1795 = vpop.f32.mrf.mxu0
        %v1796 = vadd.f32 %v1632, %v1795
        %v1797 = vpop.f32.mrf.mxu0
        %1798 = vmatprep.mubr.f32.mxu0 0.0
        %1799 = vmatmul.mubr.f32.gmra.mxu0 %v1551
        %v1800 = vpop.f32.mrf.mxu0
        %v1801 = vadd.f32 %v1632, %v1800
        %v1802 = vpop.f32.mrf.mxu0
        %1803 = vmatprep.mubr.f32.mxu0 0.0
        %1804 = vmatmul.mubr.f32.gmra.mxu0 %v1552
        %v1805 = vpop.f32.mrf.mxu0
        %v1806 = vadd.f32 %v1632, %v1805
        %v1807 = vpop.f32.mrf.mxu0
        %1808 = vmatprep.mubr.f32.mxu0 0.0
        %1809 = vmatmul.mubr.f32.gmra.mxu0 %v1553
        %v1810 = vpop.f32.mrf.mxu0
        %v1811 = vadd.f32 %v1632, %v1810
        %v1812 = vpop.f32.mrf.mxu0
        %1813 = vmatprep.mubr.f32.mxu0 0.0
        %1814 = vmatmul.mubr.f32.gmra.mxu0 %v1554
        %v1815 = vpop.f32.mrf.mxu0
        %v1816 = vadd.f32 %v1632, %v1815
        %v1817 = vpop.f32.mrf.mxu0
        %1818 = vmatprep.mubr.f32.mxu0 0.0
        %1819 = vmatmul.mubr.f32.gmra.mxu0 %v1555
        %v1820 = vpop.f32.mrf.mxu0
        %v1821 = vadd.f32 %v1632, %v1820
        %v1822 = vpop.f32.mrf.mxu0
        %1823 = vmatprep.mubr.f32.mxu0 0.0
        %1824 = vmatmul.mubr.f32.gmra.mxu0 %v1556
        %v1825 = vpop.f32.mrf.mxu0
        %v1826 = vadd.f32 %v1632, %v1825
        %v1827 = vpop.f32.mrf.mxu0
        %1828 = vmatprep.mubr.f32.mxu0 0.0
        %1829 = vmatmul.mubr.f32.gmra.mxu0 %v1557
        %v1830 = vpop.f32.mrf.mxu0
        %v1831 = vadd.f32 %v1632, %v1830
        %v1832 = vpop.f32.mrf.mxu0
        %1833 = vmatprep.mubr.f32.mxu0 0.0
        %1834 = vmatmul.mubr.f32.gmra.mxu0 %v1558
        %v1835 = vpop.f32.mrf.mxu0
        %v1836 = vadd.f32 %v1632, %v1835
        %v1837 = vpop.f32.mrf.mxu0
        %1838 = vmatprep.mubr.f32.mxu0 0.0
        %1839 = vmatmul.mubr.f32.gmra.mxu0 %v1559
        %v1840 = vpop.f32.mrf.mxu0
        %v1841 = vadd.f32 %v1632, %v1840
        %v1842 = vpop.f32.mrf.mxu0
        %1843 = vmatprep.mubr.f32.mxu0 0.0
        %1844 = vmatmul.mubr.f32.gmra.mxu0 %v1560
        %v1845 = vpop.f32.mrf.mxu0
        %v1846 = vadd.f32 %v1632, %v1845
        %v1847 = vpop.f32.mrf.mxu0
        %1848 = vmatprep.mubr.f32.mxu0 0.0
        %1849 = vmatmul.mubr.f32.gmra.mxu0 %v1561
        %v1850 = vpop.f32.mrf.mxu0
        %v1851 = vadd.f32 %v1632, %v1850
        %v1852 = vpop.f32.mrf.mxu0
        %1853 = vmatprep.mubr.f32.mxu0 0.0
        %1854 = vmatmul.mubr.f32.gmra.mxu0 %v1562
        %v1855 = vpop.f32.mrf.mxu0
        %v1856 = vadd.f32 %v1632, %v1855
        %v1857 = vpop.f32.mrf.mxu0
        %1858 = vmatprep.mubr.f32.mxu0 0.0
        %1859 = vmatmul.mubr.f32.gmra.mxu0 %v1563
        %v1860 = vpop.f32.mrf.mxu0
        %v1861 = vadd.f32 %v1632, %v1860
        %v1862 = vpop.f32.mrf.mxu0
        %1863 = vmatprep.mubr.f32.mxu0 0.0
        %1864 = vmatmul.mubr.f32.gmra.mxu0 %v1564
        %v1865 = vpop.f32.mrf.mxu0
        %v1866 = vadd.f32 %v1632, %v1865
        %v1867 = vpop.f32.mrf.mxu0
        %1868 = vmatprep.mubr.f32.mxu0 0.0
        %1869 = vmatmul.mubr.f32.gmra.mxu0 %v1565
        %v1870 = vpop.f32.mrf.mxu0
        %v1871 = vadd.f32 %v1632, %v1870
        %v1872 = vpop.f32.mrf.mxu0
        %1873 = vmatprep.mubr.f32.mxu0 0.0
        %1874 = vmatmul.mubr.f32.gmra.mxu0 %v1566
        %v1875 = vpop.f32.mrf.mxu0
        %v1876 = vadd.f32 %v1632, %v1875
        %v1877 = vpop.f32.mrf.mxu0
        %1878 = vmatprep.mubr.f32.mxu0 0.0
        %1879 = vmatmul.mubr.f32.gmra.mxu0 %v1567
        %v1880 = vpop.f32.mrf.mxu0
        %v1881 = vadd.f32 %v1632, %v1880
        %v1882 = vpop.f32.mrf.mxu0
        %1883 = vmatprep.mubr.f32.mxu0 0.0
        %1884 = vmatmul.mubr.f32.gmra.mxu0 %v1568
        %v1885 = vpop.f32.mrf.mxu0
        %v1886 = vadd.f32 %v1632, %v1885
        %v1887 = vpop.f32.mrf.mxu0
        %1888 = vmatprep.mubr.f32.mxu0 0.0
        %1889 = vmatmul.mubr.f32.gmra.mxu0 %v1569
        %v1890 = vpop.f32.mrf.mxu0
        %v1891 = vadd.f32 %v1632, %v1890
        %v1892 = vpop.f32.mrf.mxu0
        %1893 = vmatprep.mubr.f32.mxu0 0.0
        %1894 = vmatmul.mubr.f32.gmra.mxu0 %v1570
        %v1895 = vpop.f32.mrf.mxu0
        %v1896 = vadd.f32 %v1632, %v1895
        %v1897 = vpop.f32.mrf.mxu0
        %1898 = vmatprep.mubr.f32.mxu0 0.0
        %1899 = vmatmul.mubr.f32.gmra.mxu0 %v1571
        %v1900 = vpop.f32.mrf.mxu0
        %v1901 = vadd.f32 %v1632, %v1900
        %v1902 = vpop.f32.mrf.mxu0
        %1903 = vmatprep.mubr.f32.mxu0 0.0
        %1904 = vmatmul.mubr.f32.gmra.mxu0 %v1572
        %v1905 = vpop.f32.mrf.mxu0
        %v1906 = vadd.f32 %v1632, %v1905
        %v1907 = vpop.f32.mrf.mxu0
        %1908 = vmatprep.mubr.f32.mxu0 0.0
        %1909 = vmatmul.mubr.f32.gmra.mxu0 %v1573
        %v1910 = vpop.f32.mrf.mxu0
        %v1911 = vadd.f32 %v1632, %v1910
        %v1912 = vpop.f32.mrf.mxu0
        %1913 = vmatprep.mubr.f32.mxu0 0.0
        %1914 = vmatmul.mubr.f32.gmra.mxu0 %v1574
        %v1915 = vpop.f32.mrf.mxu0
        %v1916 = vadd.f32 %v1632, %v1915
        %v1917 = vpop.f32.mrf.mxu0
        %1918 = vmatprep.mubr.f32.mxu0 0.0
        %1919 = vmatmul.mubr.f32.gmra.mxu0 %v1575
        %v1920 = vpop.f32.mrf.mxu0
        %v1921 = vadd.f32 %v1632, %v1920
        %v1922 = vpop.f32.mrf.mxu0
        %1923 = vmatprep.mubr.f32.mxu0 0.0
        %1924 = vmatmul.mubr.f32.gmra.mxu0 %v1576
        %v1925 = vpop.f32.mrf.mxu0
        %v1926 = vadd.f32 %v1632, %v1925
        %v1927 = vpop.f32.mrf.mxu0
        %1928 = vmatprep.mubr.f32.mxu0 0.0
        %1929 = vmatmul.mubr.f32.gmra.mxu0 %v1577
        %v1930 = vpop.f32.mrf.mxu0
        %v1931 = vadd.f32 %v1632, %v1930
        %v1932 = vpop.f32.mrf.mxu0
        %1933 = vmatprep.mubr.f32.mxu0 0.0
        %1934 = vmatmul.mubr.f32.gmra.mxu0 %v1578
        %v1935 = vpop.f32.mrf.mxu0
        %v1936 = vadd.f32 %v1632, %v1935
        %v1937 = vpop.f32.mrf.mxu0
        %1938 = vmatprep.mubr.f32.mxu0 0.0
        %1939 = vmatmul.mubr.f32.gmra.mxu0 %v1579
        %v1940 = vpop.f32.mrf.mxu0
        %v1941 = vadd.f32 %v1632, %v1940
        %v1942 = vpop.f32.mrf.mxu0
        %1943 = vmatprep.mubr.f32.mxu0 0.0
        %1944 = vmatmul.mubr.f32.gmra.mxu0 %v1580
        %v1945 = vpop.f32.mrf.mxu0
        %v1946 = vadd.f32 %v1632, %v1945
        %v1947 = vpop.f32.mrf.mxu0
        %1948 = vmatprep.mubr.f32.mxu0 0.0
        %1949 = vmatmul.mubr.f32.gmra.mxu0 %v1581
        %v1950 = vpop.f32.mrf.mxu0
        %v1951 = vadd.f32 %v1632, %v1950
        %v1952 = vpop.f32.mrf.mxu0
        %1953 = vmatprep.mubr.f32.mxu0 0.0
        %1954 = vmatmul.mubr.f32.gmra.mxu0 %v1582
        %v1955 = vpop.f32.mrf.mxu0
        %v1956 = vadd.f32 %v1632, %v1955
        %v1957 = vpop.f32.mrf.mxu0
        %1958 = vmatprep.mubr.f32.mxu0 0.0
        %1959 = vmatmul.mubr.f32.gmra.mxu0 %v1583
        %v1960 = vpop.f32.mrf.mxu0
        %v1961 = vadd.f32 %v1632, %v1960
        %v1962 = vpop.f32.mrf.mxu0
        %1963 = vmatprep.mubr.f32.mxu0 0.0
        %1964 = vmatmul.mubr.f32.gmra.mxu0 %v1584
        %v1965 = vpop.f32.mrf.mxu0
        %v1966 = vadd.f32 %v1632, %v1965
        %v1967 = vpop.f32.mrf.mxu0
        %1968 = vmatprep.mubr.f32.mxu0 0.0
        %1969 = vmatmul.mubr.f32.gmra.mxu0 %v1585
        %v1970 = vpop.f32.mrf.mxu0
        %v1971 = vadd.f32 %v1632, %v1970
        %v1972 = vpop.f32.mrf.mxu0
        %1973 = vmatprep.mubr.f32.mxu0 0.0
        %1974 = vmatmul.mubr.f32.gmra.mxu0 %v1586
        %v1975 = vpop.f32.mrf.mxu0
        %v1976 = vadd.f32 %v1632, %v1975
        %v1977 = vpop.f32.mrf.mxu0
        %1978 = vmatprep.mubr.f32.mxu0 0.0
        %1979 = vmatmul.mubr.f32.gmra.mxu0 %v1587
        %v1980 = vpop.f32.mrf.mxu0
        %v1981 = vadd.f32 %v1632, %v1980
        %v1982 = vpop.f32.mrf.mxu0
        %1983 = vmatprep.mubr.f32.mxu0 0.0
        %1984 = vmatmul.mubr.f32.gmra.mxu0 %v1588
        %v1985 = vpop.f32.mrf.mxu0
        %v1986 = vadd.f32 %v1632, %v1985
        %v1987 = vpop.f32.mrf.mxu0
        %1988 = vmatprep.mubr.f32.mxu0 0.0
        %1989 = vmatmul.mubr.f32.gmra.mxu0 %v1589
        %v1990 = vpop.f32.mrf.mxu0
        %v1991 = vadd.f32 %v1632, %v1990
        %v1992 = vpop.f32.mrf.mxu0
        %1993 = vmatprep.mubr.f32.mxu0 0.0
        %1994 = vmatmul.mubr.f32.gmra.mxu0 %v1590
        %v1995 = vpop.f32.mrf.mxu0
        %v1996 = vadd.f32 %v1632, %v1995
        %v1997 = vpop.f32.mrf.mxu0
        %1998 = vmatprep.mubr.f32.mxu0 0.0
        %1999 = vmatmul.mubr.f32.gmra.mxu0 %v1591
        %v2000 = vpop.f32.mrf.mxu0
        %v2001 = vadd.f32 %v1632, %v2000
        %v2002 = vpop.f32.mrf.mxu0
        %2003 = vmatprep.mubr.f32.mxu0 0.0
        %2004 = vmatmul.mubr.f32.gmra.mxu0 %v1592
        %v2005 = vpop.f32.mrf.mxu0
        %v2006 = vadd.f32 %v1632, %v2005
        %v2007 = vpop.f32.mrf.mxu0
        %2008 = vmatprep.mubr.f32.mxu0 0.0
        %2009 = vmatmul.mubr.f32.gmra.mxu0 %v1593
        %v2010 = vpop.f32.mrf.mxu0
        %v2011 = vadd.f32 %v1632, %v2010
        %v2012 = vpop.f32.mrf.mxu0
        %2013 = vmatprep.mubr.f32.mxu0 0.0
        %2014 = vmatmul.mubr.f32.gmra.mxu0 %v1594
        %v2015 = vpop.f32.mrf.mxu0
        %v2016 = vadd.f32 %v1632, %v2015
        %v2017 = vpop.f32.mrf.mxu0
        %2018 = vdwg.mxu0
        %v2019 = vmax.f32 %v1701, 0.0
        %v2020 = vmax.f32 %v1706, 0.0
        %v2021 = vmax.f32 %v1711, 0.0
        %v2022 = vmax.f32 %v1716, 0.0
        %v2023 = vmax.f32 %v1721, 0.0
        %v2024 = vmax.f32 %v1726, 0.0
        %v2025 = vmax.f32 %v1731, 0.0
        %v2026 = vmax.f32 %v1736, 0.0
        %v2027 = vmax.f32 %v1741, 0.0
        %v2028 = vmax.f32 %v1746, 0.0
        %v2029 = vmax.f32 %v1751, 0.0
        %v2030 = vmax.f32 %v1756, 0.0
        %v2031 = vmax.f32 %v1761, 0.0
        %v2032 = vmax.f32 %v1766, 0.0
        %v2033 = vmax.f32 %v1771, 0.0
        %v2034 = vmax.f32 %v1776, 0.0
        %v2035 = vmax.f32 %v1781, 0.0
        %v2036 = vmax.f32 %v1786, 0.0
        %v2037 = vmax.f32 %v1791, 0.0
        %v2038 = vmax.f32 %v1796, 0.0
        %v2039 = vmax.f32 %v1801, 0.0
        %v2040 = vmax.f32 %v1806, 0.0
        %v2041 = vmax.f32 %v1811, 0.0
        %v2042 = vmax.f32 %v1816, 0.0
        %v2043 = vmax.f32 %v1821, 0.0
        %v2044 = vmax.f32 %v1826, 0.0
        %v2045 = vmax.f32 %v1831, 0.0
        %v2046 = vmax.f32 %v1836, 0.0
        %v2047 = vmax.f32 %v1841, 0.0
        %v2048 = vmax.f32 %v1846, 0.0
        %v2049 = vmax.f32 %v1851, 0.0
        %v2050 = vmax.f32 %v1856, 0.0
        %v2051 = vmax.f32 %v1861, 0.0
        %v2052 = vmax.f32 %v1866, 0.0
        %v2053 = vmax.f32 %v1871, 0.0
        %v2054 = vmax.f32 %v1876, 0.0
        %v2055 = vmax.f32 %v1881, 0.0
        %v2056 = vmax.f32 %v1886, 0.0
        %v2057 = vmax.f32 %v1891, 0.0
        %v2058 = vmax.f32 %v1896, 0.0
        %v2059 = vmax.f32 %v1901, 0.0
        %v2060 = vmax.f32 %v1906, 0.0
        %v2061 = vmax.f32 %v1911, 0.0
        %v2062 = vmax.f32 %v1916, 0.0
        %v2063 = vmax.f32 %v1921, 0.0
        %v2064 = vmax.f32 %v1926, 0.0
        %v2065 = vmax.f32 %v1931, 0.0
        %v2066 = vmax.f32 %v1936, 0.0
        %v2067 = vmax.f32 %v1941, 0.0
        %v2068 = vmax.f32 %v1946, 0.0
        %v2069 = vmax.f32 %v1951, 0.0
        %v2070 = vmax.f32 %v1956, 0.0
        %v2071 = vmax.f32 %v1961, 0.0
        %v2072 = vmax.f32 %v1966, 0.0
        %v2073 = vmax.f32 %v1971, 0.0
        %v2074 = vmax.f32 %v1976, 0.0
        %v2075 = vmax.f32 %v1981, 0.0
        %v2076 = vmax.f32 %v1986, 0.0
        %v2077 = vmax.f32 %v1991, 0.0
        %v2078 = vmax.f32 %v1996, 0.0
        %v2079 = vmax.f32 %v2001, 0.0
        %v2080 = vmax.f32 %v2006, 0.0
        %v2081 = vmax.f32 %v2011, 0.0
        %v2082 = vmax.f32 %v2016, 0.0
        %v2083 = vld [vmem:[%s7] sm:$0xf]
        %v2084 = vld [vmem:[%s7 + $0x4] sm:$0xf]
        %v2085 = vld [vmem:[%s7 + $0x8] sm:$0xf]
        %v2086 = vld [vmem:[%s7 + $0xc] sm:$0xf]
        %v2087 = vld [vmem:[%s7 + $0x10] sm:$0xf]
        %v2088 = vld [vmem:[%s7 + $0x14] sm:$0xf]
        %v2089 = vld [vmem:[%s7 + $0x18] sm:$0xf]
        %v2090 = vld [vmem:[%s7 + $0x1c] sm:$0xf]
        %v2091 = vld [vmem:[%s7 + $0x20] sm:$0xf]
        %v2092 = vld [vmem:[%s7 + $0x24] sm:$0xf]
        %v2093 = vld [vmem:[%s7 + $0x28] sm:$0xf]
        %v2094 = vld [vmem:[%s7 + $0x2c] sm:$0xf]
        %v2095 = vld [vmem:[%s7 + $0x30] sm:$0xf]
        %v2096 = vld [vmem:[%s7 + $0x34] sm:$0xf]
        %v2097 = vld [vmem:[%s7 + $0x38] sm:$0xf]
        %v2098 = vld [vmem:[%s7 + $0x3c] sm:$0xf]
        %v2099 = vunpack.c.l.bf16 %v2083
        %v2100 = vunpack.c.l.bf16 %v2084
        %v2101 = vunpack.c.l.bf16 %v2085
        %v2102 = vunpack.c.l.bf16 %v2086
        %v2103 = vunpack.c.l.bf16 %v2087
        %v2104 = vunpack.c.l.bf16 %v2088
        %v2105 = vunpack.c.l.bf16 %v2089
        %v2106 = vunpack.c.l.bf16 %v2090
        %v2107 = vunpack.c.l.bf16 %v2091
        %v2108 = vunpack.c.l.bf16 %v2092
        %v2109 = vunpack.c.l.bf16 %v2093
        %v2110 = vunpack.c.l.bf16 %v2094
        %v2111 = vunpack.c.l.bf16 %v2095
        %v2112 = vunpack.c.l.bf16 %v2096
        %v2113 = vunpack.c.l.bf16 %v2097
        %v2114 = vunpack.c.l.bf16 %v2098
        %v2115 = vld [vmem:[%s8] sm:$0x1]
        %v2117 = vlaneseq
        %v2118 = vshrl.u32 %v2117, 7
        %v2119 = vsub.s32 0, %v2118
        %v2120 = vrot.slane %v2115, %v2119
        %2122 = vmatprep.subr.mxu0 0.0
        %2123 = vmatpush1.msra.mxu0 %v2114
        %2124 = vmatprep.subr.mxu0 0.0
        %2125 = vmatpush1.msra.mxu0 %v2113
        %2126 = vmatprep.subr.mxu0 0.0
        %2127 = vmatpush1.msra.mxu0 %v2112
        %2128 = vmatprep.subr.mxu0 0.0
        %2129 = vmatpush1.msra.mxu0 %v2111
        %2130 = vmatprep.subr.mxu0 0.0
        %2131 = vmatpush1.msra.mxu0 %v2110
        %2132 = vmatprep.subr.mxu0 0.0
        %2133 = vmatpush1.msra.mxu0 %v2109
        %2134 = vmatprep.subr.mxu0 0.0
        %2135 = vmatpush1.msra.mxu0 %v2108
        %2136 = vmatprep.subr.mxu0 0.0
        %2137 = vmatpush1.msra.mxu0 %v2107
        %2138 = vmatprep.subr.mxu0 0.0
        %2139 = vmatpush1.msra.mxu0 %v2106
        %2140 = vmatprep.subr.mxu0 0.0
        %2141 = vmatpush1.msra.mxu0 %v2105
        %2142 = vmatprep.subr.mxu0 0.0
        %2143 = vmatpush1.msra.mxu0 %v2104
        %2144 = vmatprep.subr.mxu0 0.0
        %2145 = vmatpush1.msra.mxu0 %v2103
        %2146 = vmatprep.subr.mxu0 0.0
        %2147 = vmatpush1.msra.mxu0 %v2102
        %2148 = vmatprep.subr.mxu0 0.0
        %2149 = vmatpush1.msra.mxu0 %v2101
        %2150 = vmatprep.subr.mxu0 0.0
        %2151 = vmatpush1.msra.mxu0 %v2100
        %2152 = vmatprep.subr.mxu0 0.0
        %2153 = vmatpush1.msra.mxu0 %v2099
        %2154 = vmatprep.subr.mxu0 0.0
        %2155 = vmatpush2.msra.mxu0 0.0
        %2156 = vmatprep.subr.mxu0 0.0
        %2157 = vmatpush2.msra.mxu0 0.0
        %2158 = vmatprep.subr.mxu0 0.0
        %2159 = vmatpush2.msra.mxu0 0.0
        %2160 = vmatprep.subr.mxu0 0.0
        %2161 = vmatpush2.msra.mxu0 0.0
        %2162 = vmatprep.subr.mxu0 0.0
        %2163 = vmatpush2.msra.mxu0 0.0
        %2164 = vmatprep.subr.mxu0 0.0
        %2165 = vmatpush2.msra.mxu0 0.0
        %2166 = vmatprep.subr.mxu0 0.0
        %2167 = vmatpush2.msra.mxu0 0.0
        %2168 = vmatprep.subr.mxu0 0.0
        %2169 = vmatpush2.msra.mxu0 0.0
        %2170 = vmatprep.subr.mxu0 0.0
        %2171 = vmatpush2.msra.mxu0 0.0
        %2172 = vmatprep.subr.mxu0 0.0
        %2173 = vmatpush2.msra.mxu0 0.0
        %2174 = vmatprep.subr.mxu0 0.0
        %2175 = vmatpush2.msra.mxu0 0.0
        %2176 = vmatprep.subr.mxu0 0.0
        %2177 = vmatpush2.msra.mxu0 0.0
        %2178 = vmatprep.subr.mxu0 0.0
        %2179 = vmatpush2.msra.mxu0 0.0
        %2180 = vmatprep.subr.mxu0 0.0
        %2181 = vmatpush2.msra.mxu0 0.0
        %2182 = vmatprep.subr.mxu0 0.0
        %2183 = vmatpush2.msra.mxu0 0.0
        %2184 = vmatprep.subr.mxu0 0.0
        %2185 = vmatpush2.msra.mxu0 0.0
        %2186 = vmatprep.mubr.f32.mxu0 0.0
        %2187 = vmatmul.mubr.f32.gmra.mxu0 %v2019
        %v2188 = vpop.f32.mrf.mxu0
        %v2189 = vadd.f32 %v2120, %v2188
        %v2190 = vpop.f32.mrf.mxu0
        %2191 = vmatprep.mubr.f32.mxu0 0.0
        %2192 = vmatmul.mubr.f32.gmra.mxu0 %v2020
        %v2193 = vpop.f32.mrf.mxu0
        %v2194 = vadd.f32 %v2120, %v2193
        %v2195 = vpop.f32.mrf.mxu0
        %2196 = vmatprep.mubr.f32.mxu0 0.0
        %2197 = vmatmul.mubr.f32.gmra.mxu0 %v2021
        %v2198 = vpop.f32.mrf.mxu0
        %v2199 = vadd.f32 %v2120, %v2198
        %v2200 = vpop.f32.mrf.mxu0
        %2201 = vmatprep.mubr.f32.mxu0 0.0
        %2202 = vmatmul.mubr.f32.gmra.mxu0 %v2022
        %v2203 = vpop.f32.mrf.mxu0
        %v2204 = vadd.f32 %v2120, %v2203
        %v2205 = vpop.f32.mrf.mxu0
        %2206 = vmatprep.mubr.f32.mxu0 0.0
        %2207 = vmatmul.mubr.f32.gmra.mxu0 %v2023
        %v2208 = vpop.f32.mrf.mxu0
        %v2209 = vadd.f32 %v2120, %v2208
        %v2210 = vpop.f32.mrf.mxu0
        %2211 = vmatprep.mubr.f32.mxu0 0.0
        %2212 = vmatmul.mubr.f32.gmra.mxu0 %v2024
        %v2213 = vpop.f32.mrf.mxu0
        %v2214 = vadd.f32 %v2120, %v2213
        %v2215 = vpop.f32.mrf.mxu0
        %2216 = vmatprep.mubr.f32.mxu0 0.0
        %2217 = vmatmul.mubr.f32.gmra.mxu0 %v2025
        %v2218 = vpop.f32.mrf.mxu0
        %v2219 = vadd.f32 %v2120, %v2218
        %v2220 = vpop.f32.mrf.mxu0
        %2221 = vmatprep.mubr.f32.mxu0 0.0
        %2222 = vmatmul.mubr.f32.gmra.mxu0 %v2026
        %v2223 = vpop.f32.mrf.mxu0
        %v2224 = vadd.f32 %v2120, %v2223
        %v2225 = vpop.f32.mrf.mxu0
        %2226 = vmatprep.mubr.f32.mxu0 0.0
        %2227 = vmatmul.mubr.f32.gmra.mxu0 %v2027
        %v2228 = vpop.f32.mrf.mxu0
        %v2229 = vadd.f32 %v2120, %v2228
        %v2230 = vpop.f32.mrf.mxu0
        %2231 = vmatprep.mubr.f32.mxu0 0.0
        %2232 = vmatmul.mubr.f32.gmra.mxu0 %v2028
        %v2233 = vpop.f32.mrf.mxu0
        %v2234 = vadd.f32 %v2120, %v2233
        %v2235 = vpop.f32.mrf.mxu0
        %2236 = vmatprep.mubr.f32.mxu0 0.0
        %2237 = vmatmul.mubr.f32.gmra.mxu0 %v2029
        %v2238 = vpop.f32.mrf.mxu0
        %v2239 = vadd.f32 %v2120, %v2238
        %v2240 = vpop.f32.mrf.mxu0
        %2241 = vmatprep.mubr.f32.mxu0 0.0
        %2242 = vmatmul.mubr.f32.gmra.mxu0 %v2030
        %v2243 = vpop.f32.mrf.mxu0
        %v2244 = vadd.f32 %v2120, %v2243
        %v2245 = vpop.f32.mrf.mxu0
        %2246 = vmatprep.mubr.f32.mxu0 0.0
        %2247 = vmatmul.mubr.f32.gmra.mxu0 %v2031
        %v2248 = vpop.f32.mrf.mxu0
        %v2249 = vadd.f32 %v2120, %v2248
        %v2250 = vpop.f32.mrf.mxu0
        %2251 = vmatprep.mubr.f32.mxu0 0.0
        %2252 = vmatmul.mubr.f32.gmra.mxu0 %v2032
        %v2253 = vpop.f32.mrf.mxu0
        %v2254 = vadd.f32 %v2120, %v2253
        %v2255 = vpop.f32.mrf.mxu0
        %2256 = vmatprep.mubr.f32.mxu0 0.0
        %2257 = vmatmul.mubr.f32.gmra.mxu0 %v2033
        %v2258 = vpop.f32.mrf.mxu0
        %v2259 = vadd.f32 %v2120, %v2258
        %v2260 = vpop.f32.mrf.mxu0
        %2261 = vmatprep.mubr.f32.mxu0 0.0
        %2262 = vmatmul.mubr.f32.gmra.mxu0 %v2034
        %v2263 = vpop.f32.mrf.mxu0
        %v2264 = vadd.f32 %v2120, %v2263
        %v2265 = vpop.f32.mrf.mxu0
        %2266 = vmatprep.mubr.f32.mxu0 0.0
        %2267 = vmatmul.mubr.f32.gmra.mxu0 %v2035
        %v2268 = vpop.f32.mrf.mxu0
        %v2269 = vadd.f32 %v2120, %v2268
        %v2270 = vpop.f32.mrf.mxu0
        %2271 = vmatprep.mubr.f32.mxu0 0.0
        %2272 = vmatmul.mubr.f32.gmra.mxu0 %v2036
        %v2273 = vpop.f32.mrf.mxu0
        %v2274 = vadd.f32 %v2120, %v2273
        %v2275 = vpop.f32.mrf.mxu0
        %2276 = vmatprep.mubr.f32.mxu0 0.0
        %2277 = vmatmul.mubr.f32.gmra.mxu0 %v2037
        %v2278 = vpop.f32.mrf.mxu0
        %v2279 = vadd.f32 %v2120, %v2278
        %v2280 = vpop.f32.mrf.mxu0
        %2281 = vmatprep.mubr.f32.mxu0 0.0
        %2282 = vmatmul.mubr.f32.gmra.mxu0 %v2038
        %v2283 = vpop.f32.mrf.mxu0
        %v2284 = vadd.f32 %v2120, %v2283
        %v2285 = vpop.f32.mrf.mxu0
        %2286 = vmatprep.mubr.f32.mxu0 0.0
        %2287 = vmatmul.mubr.f32.gmra.mxu0 %v2039
        %v2288 = vpop.f32.mrf.mxu0
        %v2289 = vadd.f32 %v2120, %v2288
        %v2290 = vpop.f32.mrf.mxu0
        %2291 = vmatprep.mubr.f32.mxu0 0.0
        %2292 = vmatmul.mubr.f32.gmra.mxu0 %v2040
        %v2293 = vpop.f32.mrf.mxu0
        %v2294 = vadd.f32 %v2120, %v2293
        %v2295 = vpop.f32.mrf.mxu0
        %2296 = vmatprep.mubr.f32.mxu0 0.0
        %2297 = vmatmul.mubr.f32.gmra.mxu0 %v2041
        %v2298 = vpop.f32.mrf.mxu0
        %v2299 = vadd.f32 %v2120, %v2298
        %v2300 = vpop.f32.mrf.mxu0
        %2301 = vmatprep.mubr.f32.mxu0 0.0
        %2302 = vmatmul.mubr.f32.gmra.mxu0 %v2042
        %v2303 = vpop.f32.mrf.mxu0
        %v2304 = vadd.f32 %v2120, %v2303
        %v2305 = vpop.f32.mrf.mxu0
        %2306 = vmatprep.mubr.f32.mxu0 0.0
        %2307 = vmatmul.mubr.f32.gmra.mxu0 %v2043
        %v2308 = vpop.f32.mrf.mxu0
        %v2309 = vadd.f32 %v2120, %v2308
        %v2310 = vpop.f32.mrf.mxu0
        %2311 = vmatprep.mubr.f32.mxu0 0.0
        %2312 = vmatmul.mubr.f32.gmra.mxu0 %v2044
        %v2313 = vpop.f32.mrf.mxu0
        %v2314 = vadd.f32 %v2120, %v2313
        %v2315 = vpop.f32.mrf.mxu0
        %2316 = vmatprep.mubr.f32.mxu0 0.0
        %2317 = vmatmul.mubr.f32.gmra.mxu0 %v2045
        %v2318 = vpop.f32.mrf.mxu0
        %v2319 = vadd.f32 %v2120, %v2318
        %v2320 = vpop.f32.mrf.mxu0
        %2321 = vmatprep.mubr.f32.mxu0 0.0
        %2322 = vmatmul.mubr.f32.gmra.mxu0 %v2046
        %v2323 = vpop.f32.mrf.mxu0
        %v2324 = vadd.f32 %v2120, %v2323
        %v2325 = vpop.f32.mrf.mxu0
        %2326 = vmatprep.mubr.f32.mxu0 0.0
        %2327 = vmatmul.mubr.f32.gmra.mxu0 %v2047
        %v2328 = vpop.f32.mrf.mxu0
        %v2329 = vadd.f32 %v2120, %v2328
        %v2330 = vpop.f32.mrf.mxu0
        %2331 = vmatprep.mubr.f32.mxu0 0.0
        %2332 = vmatmul.mubr.f32.gmra.mxu0 %v2048
        %v2333 = vpop.f32.mrf.mxu0
        %v2334 = vadd.f32 %v2120, %v2333
        %v2335 = vpop.f32.mrf.mxu0
        %2336 = vmatprep.mubr.f32.mxu0 0.0
        %2337 = vmatmul.mubr.f32.gmra.mxu0 %v2049
        %v2338 = vpop.f32.mrf.mxu0
        %v2339 = vadd.f32 %v2120, %v2338
        %v2340 = vpop.f32.mrf.mxu0
        %2341 = vmatprep.mubr.f32.mxu0 0.0
        %2342 = vmatmul.mubr.f32.gmra.mxu0 %v2050
        %v2343 = vpop.f32.mrf.mxu0
        %v2344 = vadd.f32 %v2120, %v2343
        %v2345 = vpop.f32.mrf.mxu0
        %2346 = vmatprep.mubr.f32.mxu0 0.0
        %2347 = vmatmul.mubr.f32.gmra.mxu0 %v2051
        %v2348 = vpop.f32.mrf.mxu0
        %v2349 = vadd.f32 %v2120, %v2348
        %v2350 = vpop.f32.mrf.mxu0
        %2351 = vmatprep.mubr.f32.mxu0 0.0
        %2352 = vmatmul.mubr.f32.gmra.mxu0 %v2052
        %v2353 = vpop.f32.mrf.mxu0
        %v2354 = vadd.f32 %v2120, %v2353
        %v2355 = vpop.f32.mrf.mxu0
        %2356 = vmatprep.mubr.f32.mxu0 0.0
        %2357 = vmatmul.mubr.f32.gmra.mxu0 %v2053
        %v2358 = vpop.f32.mrf.mxu0
        %v2359 = vadd.f32 %v2120, %v2358
        %v2360 = vpop.f32.mrf.mxu0
        %2361 = vmatprep.mubr.f32.mxu0 0.0
        %2362 = vmatmul.mubr.f32.gmra.mxu0 %v2054
        %v2363 = vpop.f32.mrf.mxu0
        %v2364 = vadd.f32 %v2120, %v2363
        %v2365 = vpop.f32.mrf.mxu0
        %2366 = vmatprep.mubr.f32.mxu0 0.0
        %2367 = vmatmul.mubr.f32.gmra.mxu0 %v2055
        %v2368 = vpop.f32.mrf.mxu0
        %v2369 = vadd.f32 %v2120, %v2368
        %v2370 = vpop.f32.mrf.mxu0
        %2371 = vmatprep.mubr.f32.mxu0 0.0
        %2372 = vmatmul.mubr.f32.gmra.mxu0 %v2056
        %v2373 = vpop.f32.mrf.mxu0
        %v2374 = vadd.f32 %v2120, %v2373
        %v2375 = vpop.f32.mrf.mxu0
        %2376 = vmatprep.mubr.f32.mxu0 0.0
        %2377 = vmatmul.mubr.f32.gmra.mxu0 %v2057
        %v2378 = vpop.f32.mrf.mxu0
        %v2379 = vadd.f32 %v2120, %v2378
        %v2380 = vpop.f32.mrf.mxu0
        %2381 = vmatprep.mubr.f32.mxu0 0.0
        %2382 = vmatmul.mubr.f32.gmra.mxu0 %v2058
        %v2383 = vpop.f32.mrf.mxu0
        %v2384 = vadd.f32 %v2120, %v2383
        %v2385 = vpop.f32.mrf.mxu0
        %2386 = vmatprep.mubr.f32.mxu0 0.0
        %2387 = vmatmul.mubr.f32.gmra.mxu0 %v2059
        %v2388 = vpop.f32.mrf.mxu0
        %v2389 = vadd.f32 %v2120, %v2388
        %v2390 = vpop.f32.mrf.mxu0
        %2391 = vmatprep.mubr.f32.mxu0 0.0
        %2392 = vmatmul.mubr.f32.gmra.mxu0 %v2060
        %v2393 = vpop.f32.mrf.mxu0
        %v2394 = vadd.f32 %v2120, %v2393
        %v2395 = vpop.f32.mrf.mxu0
        %2396 = vmatprep.mubr.f32.mxu0 0.0
        %2397 = vmatmul.mubr.f32.gmra.mxu0 %v2061
        %v2398 = vpop.f32.mrf.mxu0
        %v2399 = vadd.f32 %v2120, %v2398
        %v2400 = vpop.f32.mrf.mxu0
        %2401 = vmatprep.mubr.f32.mxu0 0.0
        %2402 = vmatmul.mubr.f32.gmra.mxu0 %v2062
        %v2403 = vpop.f32.mrf.mxu0
        %v2404 = vadd.f32 %v2120, %v2403
        %v2405 = vpop.f32.mrf.mxu0
        %2406 = vmatprep.mubr.f32.mxu0 0.0
        %2407 = vmatmul.mubr.f32.gmra.mxu0 %v2063
        %v2408 = vpop.f32.mrf.mxu0
        %v2409 = vadd.f32 %v2120, %v2408
        %v2410 = vpop.f32.mrf.mxu0
        %2411 = vmatprep.mubr.f32.mxu0 0.0
        %2412 = vmatmul.mubr.f32.gmra.mxu0 %v2064
        %v2413 = vpop.f32.mrf.mxu0
        %v2414 = vadd.f32 %v2120, %v2413
        %v2415 = vpop.f32.mrf.mxu0
        %2416 = vmatprep.mubr.f32.mxu0 0.0
        %2417 = vmatmul.mubr.f32.gmra.mxu0 %v2065
        %v2418 = vpop.f32.mrf.mxu0
        %v2419 = vadd.f32 %v2120, %v2418
        %v2420 = vpop.f32.mrf.mxu0
        %2421 = vmatprep.mubr.f32.mxu0 0.0
        %2422 = vmatmul.mubr.f32.gmra.mxu0 %v2066
        %v2423 = vpop.f32.mrf.mxu0
        %v2424 = vadd.f32 %v2120, %v2423
        %v2425 = vpop.f32.mrf.mxu0
        %2426 = vmatprep.mubr.f32.mxu0 0.0
        %2427 = vmatmul.mubr.f32.gmra.mxu0 %v2067
        %v2428 = vpop.f32.mrf.mxu0
        %v2429 = vadd.f32 %v2120, %v2428
        %v2430 = vpop.f32.mrf.mxu0
        %2431 = vmatprep.mubr.f32.mxu0 0.0
        %2432 = vmatmul.mubr.f32.gmra.mxu0 %v2068
        %v2433 = vpop.f32.mrf.mxu0
        %v2434 = vadd.f32 %v2120, %v2433
        %v2435 = vpop.f32.mrf.mxu0
        %2436 = vmatprep.mubr.f32.mxu0 0.0
        %2437 = vmatmul.mubr.f32.gmra.mxu0 %v2069
        %v2438 = vpop.f32.mrf.mxu0
        %v2439 = vadd.f32 %v2120, %v2438
        %v2440 = vpop.f32.mrf.mxu0
        %2441 = vmatprep.mubr.f32.mxu0 0.0
        %2442 = vmatmul.mubr.f32.gmra.mxu0 %v2070
        %v2443 = vpop.f32.mrf.mxu0
        %v2444 = vadd.f32 %v2120, %v2443
        %v2445 = vpop.f32.mrf.mxu0
        %2446 = vmatprep.mubr.f32.mxu0 0.0
        %2447 = vmatmul.mubr.f32.gmra.mxu0 %v2071
        %v2448 = vpop.f32.mrf.mxu0
        %v2449 = vadd.f32 %v2120, %v2448
        %v2450 = vpop.f32.mrf.mxu0
        %2451 = vmatprep.mubr.f32.mxu0 0.0
        %2452 = vmatmul.mubr.f32.gmra.mxu0 %v2072
        %v2453 = vpop.f32.mrf.mxu0
        %v2454 = vadd.f32 %v2120, %v2453
        %v2455 = vpop.f32.mrf.mxu0
        %2456 = vmatprep.mubr.f32.mxu0 0.0
        %2457 = vmatmul.mubr.f32.gmra.mxu0 %v2073
        %v2458 = vpop.f32.mrf.mxu0
        %v2459 = vadd.f32 %v2120, %v2458
        %v2460 = vpop.f32.mrf.mxu0
        %2461 = vmatprep.mubr.f32.mxu0 0.0
        %2462 = vmatmul.mubr.f32.gmra.mxu0 %v2074
        %v2463 = vpop.f32.mrf.mxu0
        %v2464 = vadd.f32 %v2120, %v2463
        %v2465 = vpop.f32.mrf.mxu0
        %2466 = vmatprep.mubr.f32.mxu0 0.0
        %2467 = vmatmul.mubr.f32.gmra.mxu0 %v2075
        %v2468 = vpop.f32.mrf.mxu0
        %v2469 = vadd.f32 %v2120, %v2468
        %v2470 = vpop.f32.mrf.mxu0
        %2471 = vmatprep.mubr.f32.mxu0 0.0
        %2472 = vmatmul.mubr.f32.gmra.mxu0 %v2076
        %v2473 = vpop.f32.mrf.mxu0
        %v2474 = vadd.f32 %v2120, %v2473
        %v2475 = vpop.f32.mrf.mxu0
        %2476 = vmatprep.mubr.f32.mxu0 0.0
        %2477 = vmatmul.mubr.f32.gmra.mxu0 %v2077
        %v2478 = vpop.f32.mrf.mxu0
        %v2479 = vadd.f32 %v2120, %v2478
        %v2480 = vpop.f32.mrf.mxu0
        %2481 = vmatprep.mubr.f32.mxu0 0.0
        %2482 = vmatmul.mubr.f32.gmra.mxu0 %v2078
        %v2483 = vpop.f32.mrf.mxu0
        %v2484 = vadd.f32 %v2120, %v2483
        %v2485 = vpop.f32.mrf.mxu0
        %2486 = vmatprep.mubr.f32.mxu0 0.0
        %2487 = vmatmul.mubr.f32.gmra.mxu0 %v2079
        %v2488 = vpop.f32.mrf.mxu0
        %v2489 = vadd.f32 %v2120, %v2488
        %v2490 = vpop.f32.mrf.mxu0
        %2491 = vmatprep.mubr.f32.mxu0 0.0
        %2492 = vmatmul.mubr.f32.gmra.mxu0 %v2080
        %v2493 = vpop.f32.mrf.mxu0
        %v2494 = vadd.f32 %v2120, %v2493
        %v2495 = vpop.f32.mrf.mxu0
        %2496 = vmatprep.mubr.f32.mxu0 0.0
        %2497 = vmatmul.mubr.f32.gmra.mxu0 %v2081
        %v2498 = vpop.f32.mrf.mxu0
        %v2499 = vadd.f32 %v2120, %v2498
        %v2500 = vpop.f32.mrf.mxu0
        %2501 = vmatprep.mubr.f32.mxu0 0.0
        %2502 = vmatmul.mubr.f32.gmra.mxu0 %v2082
        %v2503 = vpop.f32.mrf.mxu0
        %v2504 = vadd.f32 %v2120, %v2503
        %v2505 = vpop.f32.mrf.mxu0
        %2506 = vdwg.mxu0
        %2507 = vst [vmem:[%s342] sm:$0xff] %v2189
        %2508 = vst [vmem:[%s342 + $0x8] sm:$0xff] %v2194
        %2509 = vst [vmem:[%s342 + $0x10] sm:$0xff] %v2199
        %2510 = vst [vmem:[%s342 + $0x18] sm:$0xff] %v2204
        %2511 = vst [vmem:[%s342 + $0x20] sm:$0xff] %v2209
        %2512 = vst [vmem:[%s342 + $0x28] sm:$0xff] %v2214
        %2513 = vst [vmem:[%s342 + $0x30] sm:$0xff] %v2219
        %2514 = vst [vmem:[%s342 + $0x38] sm:$0xff] %v2224
        %2515 = vst [vmem:[%s342 + $0x40] sm:$0xff] %v2229
        %2516 = vst [vmem:[%s342 + $0x48] sm:$0xff] %v2234
        %2517 = vst [vmem:[%s342 + $0x50] sm:$0xff] %v2239
        %2518 = vst [vmem:[%s342 + $0x58] sm:$0xff] %v2244
        %2519 = vst [vmem:[%s342 + $0x60] sm:$0xff] %v2249
        %2520 = vst [vmem:[%s342 + $0x68] sm:$0xff] %v2254
        %2521 = vst [vmem:[%s342 + $0x70] sm:$0xff] %v2259
        %2522 = vst [vmem:[%s342 + $0x78] sm:$0xff] %v2264
        %2523 = vst [vmem:[%s342 + $0x80] sm:$0xff] %v2269
        %2524 = vst [vmem:[%s342 + $0x88] sm:$0xff] %v2274
        %2525 = vst [vmem:[%s342 + $0x90] sm:$0xff] %v2279
        %2526 = vst [vmem:[%s342 + $0x98] sm:$0xff] %v2284
        %2527 = vst [vmem:[%s342 + $0xa0] sm:$0xff] %v2289
        %2528 = vst [vmem:[%s342 + $0xa8] sm:$0xff] %v2294
        %2529 = vst [vmem:[%s342 + $0xb0] sm:$0xff] %v2299
        %2530 = vst [vmem:[%s342 + $0xb8] sm:$0xff] %v2304
        %2531 = vst [vmem:[%s342 + $0xc0] sm:$0xff] %v2309
        %2532 = vst [vmem:[%s342 + $0xc8] sm:$0xff] %v2314
        %2533 = vst [vmem:[%s342 + $0xd0] sm:$0xff] %v2319
        %2534 = vst [vmem:[%s342 + $0xd8] sm:$0xff] %v2324
        %2535 = vst [vmem:[%s342 + $0xe0] sm:$0xff] %v2329
        %2536 = vst [vmem:[%s342 + $0xe8] sm:$0xff] %v2334
        %2537 = vst [vmem:[%s342 + $0xf0] sm:$0xff] %v2339
        %2538 = vst [vmem:[%s342 + $0xf8] sm:$0xff] %v2344
        %2539 = vst [vmem:[%s342 + $0x100] sm:$0xff] %v2349
        %2540 = vst [vmem:[%s342 + $0x108] sm:$0xff] %v2354
        %2541 = vst [vmem:[%s342 + $0x110] sm:$0xff] %v2359
        %2542 = vst [vmem:[%s342 + $0x118] sm:$0xff] %v2364
        %2543 = vst [vmem:[%s342 + $0x120] sm:$0xff] %v2369
        %2544 = vst [vmem:[%s342 + $0x128] sm:$0xff] %v2374
        %2545 = vst [vmem:[%s342 + $0x130] sm:$0xff] %v2379
        %2546 = vst [vmem:[%s342 + $0x138] sm:$0xff] %v2384
        %2547 = vst [vmem:[%s342 + $0x140] sm:$0xff] %v2389
        %2548 = vst [vmem:[%s342 + $0x148] sm:$0xff] %v2394
        %2549 = vst [vmem:[%s342 + $0x150] sm:$0xff] %v2399
        %2550 = vst [vmem:[%s342 + $0x158] sm:$0xff] %v2404
        %2551 = vst [vmem:[%s342 + $0x160] sm:$0xff] %v2409
        %2552 = vst [vmem:[%s342 + $0x168] sm:$0xff] %v2414
        %2553 = vst [vmem:[%s342 + $0x170] sm:$0xff] %v2419
        %2554 = vst [vmem:[%s342 + $0x178] sm:$0xff] %v2424
        %2555 = vst [vmem:[%s342 + $0x180] sm:$0xff] %v2429
        %2556 = vst [vmem:[%s342 + $0x188] sm:$0xff] %v2434
        %2557 = vst [vmem:[%s342 + $0x190] sm:$0xff] %v2439
        %2558 = vst [vmem:[%s342 + $0x198] sm:$0xff] %v2444
        %2559 = vst [vmem:[%s342 + $0x1a0] sm:$0xff] %v2449
        %2560 = vst [vmem:[%s342 + $0x1a8] sm:$0xff] %v2454
        %2561 = vst [vmem:[%s342 + $0x1b0] sm:$0xff] %v2459
        %2562 = vst [vmem:[%s342 + $0x1b8] sm:$0xff] %v2464
        %2563 = vst [vmem:[%s342 + $0x1c0] sm:$0xff] %v2469
        %2564 = vst [vmem:[%s342 + $0x1c8] sm:$0xff] %v2474
        %2565 = vst [vmem:[%s342 + $0x1d0] sm:$0xff] %v2479
        %2566 = vst [vmem:[%s342 + $0x1d8] sm:$0xff] %v2484
        %2567 = vst [vmem:[%s342 + $0x1e0] sm:$0xff] %v2489
        %2568 = vst [vmem:[%s342 + $0x1e8] sm:$0xff] %v2494
        %2569 = vst [vmem:[%s342 + $0x1f0] sm:$0xff] %v2499
        %2570 = vst [vmem:[%s342 + $0x1f8] sm:$0xff] %v2504
        %s2571 = sand.u32 %s230, 1
        %s2572 = scalar_lea.sflag [#allocation3], %s2571
        %s2573 = sand.u32 %s230, 1
        %s2574 = smul.addr %s2573, 512
        %s2575 = scalar_lea.vmem [#allocation2], %s2574
        // Predicated region
        $region57: #{tpu_custom_call.1} parent=55 // pred_check
          %p2576 = pneg %p240
        $region58: #{tpu_custom_call.1} parent=55 // pred_check_branch
          %2578 = sbr.rel (%p2576) target = $region60
        $region59: #{tpu_custom_call.1} parent=55 // pred_region
          %s2579 = smul.u32 64, %s23
          %s2581 = ssub.s32 8192, 8192
          %2582 = vsyncadd %s2572, %s2581
          %s2583 = smul.addr %s2579, 128
          %s2584 = scalar_lea.hbm %s9, %s2583
          %s2585 = sshll.u32 %s2575, 4
          %s2586 = int_to_ptr.vmem [resolvable:$true] %s2585
          %2591 = dma.vmem_to_hbm [thread:$0]  %s2586, 8192, %s2584, %s2572, 128, 128, 8
        $region60: #{tpu_custom_call.1} parent=55 // pred_fallthru
          _
      $region56: #{tpu_custom_call.1} parent=5 // pred_fallthru
        _
      %p2592 = scmp.le.s32.totalorder 2, %s18
      // Predicated region
      $region61: #{tpu_custom_call.1} parent=5 // pred_check
        %p2593 = pneg %p2592
      $region62: #{tpu_custom_call.1} parent=5 // pred_check_branch
        %2595 = sbr.rel (%p2593) target = $region64
      $region63: #{tpu_custom_call.1} parent=5 // pred_region
        %s2596 = ssub.s32 %s18, 2
        // Predicated region
        $region65: #{tpu_custom_call.1} parent=63 // pred_check
          %p2597 = pneg %p246
        $region66: #{tpu_custom_call.1} parent=63 // pred_check_branch
          %2599 = sbr.rel (%p2597) target = $region68
        $region67: #{tpu_custom_call.1} parent=63 // pred_region
          %s2600 = sand.u32 %s231, 1
          %s2601 = scalar_lea.sflag [#allocation3], %s2600
          %s2602 = sand.u32 %s231, 1
          %s2603 = smul.addr %s2602, 512
          %s2604 = scalar_lea.vmem [#allocation2], %s2603
          %2605 = dma.done %s2601, 8192
        $region68: #{tpu_custom_call.1} parent=63 // pred_fallthru
          _
      $region64: #{tpu_custom_call.1} parent=5 // pred_fallthru
        _
    $region6: #{tpu_custom_call.1} parent=1 // loop_footer
      %s22 = sadd.s32 1, %s18
    $region7: #{tpu_custom_call.1} parent=1 // loop_footer_branch
      %17 = sbr.rel target = $region3
    $region8: #{tpu_custom_call.1} parent=1 // loop_exit
      _
    %2606 = vsyncpa [#allocation3], 1
    %s2607 = scalar_lea.sflag [#allocation3], 1
    %2608 = vsyncpa %s2607, 1

</llo_original>
